<compile_context>
chip_gen: v7x
topology: tpu7x:2x2x1
jax: 0.10.0
libtpu: 0.0.40
codegen_flags: <defaults>
</compile_context>

<pallas_src>
import numpy as np

import jax
import jax.numpy as jnp
from jax.experimental import pallas as pl
from jax.experimental.pallas import tpu as pltpu


LATENT_DIM = 16
C1, C2 = 16, 32
H1, H2 = 14, 7              # conv1 / conv2 output spatial sizes
K1 = 3 * 30                 # conv1 im2col contraction: 3 kh-rows x 30 padded cols
S1_LANES = 16 * C1          # 256 conv1 output lanes: (w_padded 0..15, ci); blocks 0/15 = width pad
R2_LANES = 8 * C2           # 256 conv2 output lanes: (wo 0..6, co) + 32 zero-pad lanes
FC3_K = H2 * R2_LANES       # 1792 (= 1568 real + pad rows)
FC3_N = 128


# ---------------------------------------------------------------------------
# The single fused kernel
# ---------------------------------------------------------------------------
def _encoder_kernel(lhs1_ref, t1_ref, b1_ref, t2_hbm, b2_ref, w3_hbm, b3_ref,
                    w4_ref, b4_ref, eps_ref, out_ref,
                    s1_ref, f3_ref, t2_ref, w3_ref, dma_sem):
    """lhs1_ref: (14*B, 90) bf16   conv1 im2col rows, ordered [odd ho | even ho], (row, b)
       t1_ref  : (90, 256) bf16    conv1 row-Toeplitz weights
       b1_ref  : (1, 256)  f32     conv1 bias (zero on width-pad lane blocks)
       t2_hbm  : (3, 256, 256) bf16 HBM   conv2 row-Toeplitz weights (manual DMA)
       b2_ref  : (1, 256)  f32
       w3_hbm  : (1792, 128) bf16 HBM     fc3 weights (manual DMA)
       b3_ref  : (1, 128)  f32
       w4_ref  : (128, 32) bf16
       b4_ref  : (1, 32)   f32
       eps_ref : (B, 16)   f32
       out_ref : (B, 16)   f32
       scratch : s1 (15B,256) bf16, f3 (B,1792) bf16, t2 (3,256,256) bf16,
                 w3 (1792,128) bf16, dma_sem DMA(2)
    """
    B = out_ref.shape[0]

    # Kick off the big weight DMAs so they overlap conv1 (~850 KB hidden).
    t2_cp = pltpu.make_async_copy(t2_hbm, t2_ref, dma_sem.at[0])
    w3_cp = pltpu.make_async_copy(w3_hbm, w3_ref, dma_sem.at[1])
    t2_cp.start()
    w3_cp.start()

    # ---- Conv1 + ReLU: ONE (14B, 90) x (90, 256) matmul -------------------
    r1 = jnp.dot(lhs1_ref[...], t1_ref[...], preferred_element_type=jnp.float32)
    r1 = jnp.maximum(r1 + b1_ref[...], 0.0)            # (14B, 256) f32
    # Parity-split scratch: rows [0,B) = zero pad row (conv2 top padding),
    # [B,8B) = odd conv1 rows ho=1,3,...,13, [8B,15B) = even rows ho=0,2,...,12.
    # lhs1 row order was chosen so r1 lands here with ONE contiguous store.
    s1_ref[0:B, :] = jnp.zeros((B, S1_LANES), s1_ref.dtype)
    s1_ref[B:15 * B, :] = r1.astype(s1_ref.dtype)

    # ---- Conv2 + ReLU: THREE (7B, 256) x (256, 256) matmuls ---------------
    t2_cp.wait()
    acc2 = jnp.dot(s1_ref[0:7 * B, :], t2_ref[0],       # kh=0: pad row + odd rows 1..11
                   preferred_element_type=jnp.float32)
    acc2 += jnp.dot(s1_ref[8 * B:15 * B, :], t2_ref[1],  # kh=1: even rows 0..12
                    preferred_element_type=jnp.float32)
    acc2 += jnp.dot(s1_ref[B:8 * B, :], t2_ref[2],       # kh=2: odd rows 1..13
                    preferred_element_type=jnp.float32)
    h2 = jnp.maximum(acc2 + b2_ref[...], 0.0).astype(jnp.bfloat16)  # (7B, 256), rows (ho2, b)

    # ---- Regroup to (B, 1792) lane-dense fc3 input (7 aligned block writes) -
    for r in range(H2):
        f3_ref[:, r * R2_LANES:(r + 1) * R2_LANES] = h2[r * B:(r + 1) * B, :]

    # ---- fc3 + ReLU: ONE long-K (B, 1792) x (1792, 128) matmul ------------
    w3_cp.wait()
    h3 = jnp.dot(f3_ref[...], w3_ref[...], preferred_element_type=jnp.float32)
    h3 = jnp.maximum(h3 + b3_ref[...], 0.0).astype(jnp.bfloat16)    # (B, 128)

    # ---- fc4, chunk, reparameterization epilogue ---------------------------
    p = jnp.dot(h3, w4_ref[...], preferred_element_type=jnp.float32) + b4_ref[...]
    mu = p[:, :LATENT_DIM]
    log_var = p[:, LATENT_DIM:2 * LATENT_DIM]
    z = mu + eps_ref[...] * jnp.exp(0.5 * log_var)                  # f32 (EUP exp)
    out_ref[...] = z.astype(out_ref.dtype)


# ---------------------------------------------------------------------------
# Parameter init (PyTorch-like) and one-time weight re-layout
# ---------------------------------------------------------------------------
def init_params(key, latent_dim=LATENT_DIM):
    ks = jax.random.split(key, 8)

    def u(k, shape, fan_in):
        bound = 1.0 / np.sqrt(fan_in)
        return jax.random.uniform(k, shape, jnp.float32, -bound, bound)

    return {
        "w1": u(ks[0], (16, 1, 3, 3), 9),        "b1": u(ks[1], (16,), 9),
        "w2": u(ks[2], (32, 16, 3, 3), 16 * 9),  "b2": u(ks[3], (32,), 16 * 9),
        "w3": u(ks[4], (128, 32 * 7 * 7), 32 * 7 * 7),
        "b3": u(ks[5], (128,), 32 * 7 * 7),
        "w4": u(ks[6], (2 * latent_dim, 128), 128),
        "b4": u(ks[7], (2 * latent_dim,), 128),
    }


def prepare_params(params):
    """One-time re-layout: fold im2col structure, all transposes, the PyTorch
    (C,H,W)-flatten permutation and the 256-lane padding into the weights."""
    w1 = np.asarray(params["w1"], np.float32)
    b1 = np.asarray(params["b1"], np.float32)
    w2 = np.asarray(params["w2"], np.float32)
    b2 = np.asarray(params["b2"], np.float32)
    w3 = np.asarray(params["w3"], np.float32)
    b3 = np.asarray(params["b3"], np.float32)
    w4 = np.asarray(params["w4"], np.float32)
    b4 = np.asarray(params["b4"], np.float32)

    # conv1 row-Toeplitz, K stacked over kh: (3*30, 256), out lane = w_pad*16 + ci.
    t1 = np.zeros((3, 30, S1_LANES), np.float32)
    b1_row = np.zeros((1, S1_LANES), np.float32)
    for kh in range(3):
        for kw in range(3):
            for w in range(1, 15):               # padded output column index (1..14 valid)
                w_in = 2 * (w - 1) + kw
                t1[kh, w_in, w * C1:(w + 1) * C1] = w1[:, 0, kh, kw]
    for w in range(1, 15):
        b1_row[0, w * C1:(w + 1) * C1] = b1      # zero on width-pad blocks 0/15
    t1 = t1.reshape(K1, S1_LANES)

    # conv2 row-Toeplitz: in lanes (w_in, ci), out lanes (wo, co) padded to 256.
    t2 = np.zeros((3, S1_LANES, R2_LANES), np.float32)
    b2_row = np.zeros((1, R2_LANES), np.float32)
    for kh in range(3):
        for kw in range(3):
            for wo in range(H2):
                w_in = 2 * wo + kw
                t2[kh, w_in * C1:(w_in + 1) * C1,
                   wo * C2:(wo + 1) * C2] = w2[:, :, kh, kw].T
    for wo in range(H2):
        b2_row[0, wo * C2:(wo + 1) * C2] = b2

    # fc3: permute PyTorch flatten order (c*49 + h*7 + w) to kernel lane order
    # (h*256 + w*32 + c) with zero rows on the 224->256 pad lanes.
    w3_blk = w3.reshape(FC3_N, C2, H2, H2).transpose(2, 3, 1, 0)   # (h, w, c, n)
    w3_blk = w3_blk.reshape(H2, H2 * C2, FC3_N)                    # (7, 224, 128)
    w3_pad = np.zeros((H2, R2_LANES, FC3_N), np.float32)
    w3_pad[:, :H2 * C2, :] = w3_blk
    w3_flat = w3_pad.reshape(FC3_K, FC3_N)                         # (1792, 128)

    return {
        "t1": jnp.asarray(t1, jnp.bfloat16),
        "b1": jnp.asarray(b1_row, jnp.float32),
        "t2": jnp.asarray(t2, jnp.bfloat16),
        "b2": jnp.asarray(b2_row, jnp.float32),
        "w3": jnp.asarray(w3_flat, jnp.bfloat16),
        "b3": jnp.asarray(b3.reshape(1, FC3_N), jnp.float32),
        "w4": jnp.asarray(w4.T, jnp.bfloat16),                     # (128, 32)
        "b4": jnp.asarray(b4.reshape(1, 2 * LATENT_DIM), jnp.float32),
    }


# ---------------------------------------------------------------------------
# Forward: one tiny fused im2col prep + one fused pallas_call
# ---------------------------------------------------------------------------
def encoder_forward(prep, x, eps):
    B = x.shape[0]
    # Build the conv1 im2col LHS (14*B, 90) bf16 in a single small fused XLA op.
    # Row order = [odd output rows ho=1,3..13 | even rows ho=0,2..12], each (row, b),
    # matching the kernel's parity-split scratch so conv1 needs exactly one store.
    xp = jnp.pad(x[:, 0], ((0, 0), (1, 1), (1, 1)))                       # (B, 30, 30)
    win = jnp.stack([xp[:, 0:28:2], xp[:, 1:29:2], xp[:, 2:30:2]], axis=2)  # (B,14,3,30)
    win = win.reshape(B, H1, K1)
    lhs1 = jnp.concatenate([win[:, 1::2], win[:, 0::2]], axis=1)          # odd | even
    lhs1 = lhs1.transpose(1, 0, 2).reshape(H1 * B, K1).astype(jnp.bfloat16)

    def vmem_full(shape):
        return pl.BlockSpec(shape, lambda i, _n=len(shape): (0,) * _n)

    any_spec = pl.BlockSpec(memory_space=pl.ANY)   # raw HBM ref -> manual DMA in kernel

    args = (lhs1, prep["t1"], prep["b1"], prep["t2"], prep["b2"],
            prep["w3"], prep["b3"], prep["w4"], prep["b4"], eps)
    in_specs = [vmem_full(lhs1.shape), vmem_full(prep["t1"].shape),
                vmem_full(prep["b1"].shape), any_spec, vmem_full(prep["b2"].shape),
                any_spec, vmem_full(prep["b3"].shape), vmem_full(prep["w4"].shape),
                vmem_full(prep["b4"].shape), vmem_full(eps.shape)]

    return pl.pallas_call(
        _encoder_kernel,
        out_shape=jax.ShapeDtypeStruct((B, LATENT_DIM), jnp.float32),
        grid=(1,),
        in_specs=in_specs,
        out_specs=vmem_full((B, LATENT_DIM)),
        scratch_shapes=[
            pltpu.VMEM((15 * B, S1_LANES), jnp.bfloat16),   # parity-split conv1 output
            pltpu.VMEM((B, FC3_K), jnp.bfloat16),           # lane-dense fc3 input
            pltpu.VMEM((3, S1_LANES, R2_LANES), jnp.bfloat16),  # t2 landing buffer
            pltpu.VMEM((FC3_K, FC3_N), jnp.bfloat16),       # w3 landing buffer
            pltpu.SemaphoreType.DMA((2,)),
        ],
        compiler_params=pltpu.CompilerParams(
            dimension_semantics=("arbitrary",)),
    )(*args)


# ---------------------------------------------------------------------------
# Pure-numpy reference of the PyTorch module (f32) for a loose parity check
# ---------------------------------------------------------------------------
def _numpy_reference(params, x, eps):
    w1 = np.asarray(params["w1"], np.float32); b1 = np.asarray(params["b1"], np.float32)
    w2 = np.asarray(params["w2"], np.float32); b2 = np.asarray(params["b2"], np.float32)
    w3 = np.asarray(params["w3"], np.float32); b3 = np.asarray(params["b3"], np.float32)
    w4 = np.asarray(params["w4"], np.float32); b4 = np.asarray(params["b4"], np.float32)

    def conv(xi, w, b, stride=2, pad=1):
        Bn, _, H, W = xi.shape
        KH, KW = w.shape[2], w.shape[3]
        Ho = (H + 2 * pad - KH) // stride + 1
        Wo = (W + 2 * pad - KW) // stride + 1
        xpd = np.pad(xi, ((0, 0), (0, 0), (pad, pad), (pad, pad)))
        out = np.zeros((Bn, w.shape[0], Ho, Wo), np.float32)
        for kh in range(KH):
            for kw in range(KW):
                patch = xpd[:, :, kh:kh + stride * (Ho - 1) + 1:stride,
                            kw:kw + stride * (Wo - 1) + 1:stride]
                out += np.einsum("bchw,oc->bohw", patch, w[:, :, kh, kw])
        return out + b[None, :, None, None]

    h1 = np.maximum(conv(x, w1, b1), 0.0)
    h2 = np.maximum(conv(h1, w2, b2), 0.0)
    h3 = np.maximum(h2.reshape(x.shape[0], -1) @ w3.T + b3, 0.0)
    p = h3 @ w4.T + b4
    mu, log_var = p[:, :LATENT_DIM], p[:, LATENT_DIM:]
    return mu + eps * np.exp(0.5 * log_var)


if __name__ == "__main__":
    key = jax.random.PRNGKey(0)
    k_param, k_x, k_eps = jax.random.split(key, 3)

    params = init_params(k_param, LATENT_DIM)
    prep = prepare_params(params)                 # one-time weight re-layout

    # Input geometry fixed by the module (Flatten -> Linear(32*7*7, 128)).
    x = jax.random.normal(k_x, (2, 1, 28, 28), jnp.float32)
    # TODO(synk): torch.randn_like(std) is drawn inside PyTorch's forward; eps is
    # supplied explicitly here (pltpu.prng_seed/prng_random_bits could generate it
    # in-kernel from a scalar seed instead).
    eps = jax.random.normal(k_eps, (2, LATENT_DIM), jnp.float32)

    fwd = jax.jit(encoder_forward)
    z = jax.block_until_ready(fwd(prep, x, eps))
    assert z.shape == (2, LATENT_DIM) and z.dtype == jnp.float32

    # Loose parity check vs. f32 reference (bf16 matmul operands => ~1e-2 level).
    z_ref = _numpy_reference(params, np.asarray(x), np.asarray(eps))
    err = float(np.max(np.abs(np.asarray(z) - z_ref)))
    assert np.isfinite(err) and err < 5e-2, f"max abs deviation too large: {err}"
    print("KERNEL_OK")
</pallas_src>

<mosaic_0001>
module attributes {stable_mosaic.version = 11 : i64} {
  func.func @_encoder_kernel(%arg0: i32, %arg1: memref<28x90xbf16, #tpu.memory_space<vmem>>, %arg2: memref<90x256xbf16, #tpu.memory_space<vmem>>, %arg3: memref<1x256xf32, #tpu.memory_space<vmem>>, %arg4: memref<3x256x256xbf16, #tpu.memory_space<any>>, %arg5: memref<1x256xf32, #tpu.memory_space<vmem>>, %arg6: memref<1792x128xbf16, #tpu.memory_space<any>>, %arg7: memref<1x128xf32, #tpu.memory_space<vmem>>, %arg8: memref<128x32xbf16, #tpu.memory_space<vmem>>, %arg9: memref<1x32xf32, #tpu.memory_space<vmem>>, %arg10: memref<2x16xf32, #tpu.memory_space<vmem>>, %arg11: memref<2x16xf32, #tpu.memory_space<vmem>>, %arg12: memref<30x256xbf16, #tpu.memory_space<vmem>>, %arg13: memref<2x1792xbf16, #tpu.memory_space<vmem>>, %arg14: memref<3x256x256xbf16, #tpu.memory_space<vmem>>, %arg15: memref<1792x128xbf16, #tpu.memory_space<vmem>>, %arg16: memref<2x!tpu.dma_semaphore, #tpu.memory_space<semaphore_mem>>) attributes {dimension_semantics = [#tpu.dimension_semantics<arbitrary>], iteration_bounds = array<i64: 1>, scalar_prefetch = 0 : i64, scratch_operands = 5 : i64, tpu.core_type = #tpu.core_type<tc>, window_params = [{pipeline_mode = #tpu.pipeline_mode<synchronous>, transform_indices = @transform_0, window_bounds = array<i64: 28, 90>}, {pipeline_mode = #tpu.pipeline_mode<synchronous>, transform_indices = @transform_1, window_bounds = array<i64: 90, 256>}, {pipeline_mode = #tpu.pipeline_mode<synchronous>, transform_indices = @transform_2, window_bounds = array<i64: 1, 256>}, {}, {pipeline_mode = #tpu.pipeline_mode<synchronous>, transform_indices = @transform_4, window_bounds = array<i64: 1, 256>}, {}, {pipeline_mode = #tpu.pipeline_mode<synchronous>, transform_indices = @transform_6, window_bounds = array<i64: 1, 128>}, {pipeline_mode = #tpu.pipeline_mode<synchronous>, transform_indices = @transform_7, window_bounds = array<i64: 128, 32>}, {pipeline_mode = #tpu.pipeline_mode<synchronous>, transform_indices = @transform_8, window_bounds = array<i64: 1, 32>}, {pipeline_mode = #tpu.pipeline_mode<synchronous>, transform_indices = @transform_9, window_bounds = array<i64: 2, 16>}, {pipeline_mode = #tpu.pipeline_mode<synchronous>, transform_indices = @transform_10, window_bounds = array<i64: 2, 16>}]} {
    %c0_i32 = arith.constant 0 : i32
    %0 = tpu.memref_slice %arg16[%c0_i32] : memref<2x!tpu.dma_semaphore, #tpu.memory_space<semaphore_mem>> -> memref<1x!tpu.dma_semaphore, #tpu.memory_space<semaphore_mem>>
    %1 = tpu.memref_squeeze %0 : memref<1x!tpu.dma_semaphore, #tpu.memory_space<semaphore_mem>> -> memref<!tpu.dma_semaphore, #tpu.memory_space<semaphore_mem>>
    tpu.enqueue_dma source(%arg4 : memref<3x256x256xbf16, #tpu.memory_space<any>>) target(%arg14 : memref<3x256x256xbf16, #tpu.memory_space<vmem>>) target_semaphore(%1 : memref<!tpu.dma_semaphore, #tpu.memory_space<semaphore_mem>>)
    %c1_i32 = arith.constant 1 : i32
    %2 = tpu.memref_slice %arg16[%c1_i32] : memref<2x!tpu.dma_semaphore, #tpu.memory_space<semaphore_mem>> -> memref<1x!tpu.dma_semaphore, #tpu.memory_space<semaphore_mem>>
    %3 = tpu.memref_squeeze %2 : memref<1x!tpu.dma_semaphore, #tpu.memory_space<semaphore_mem>> -> memref<!tpu.dma_semaphore, #tpu.memory_space<semaphore_mem>>
    tpu.enqueue_dma source(%arg6 : memref<1792x128xbf16, #tpu.memory_space<any>>) target(%arg15 : memref<1792x128xbf16, #tpu.memory_space<vmem>>) target_semaphore(%3 : memref<!tpu.dma_semaphore, #tpu.memory_space<semaphore_mem>>)
    %c0 = arith.constant 0 : index
    %c0_0 = arith.constant 0 : index
    %4 = vector.load %arg1[%c0, %c0_0] : memref<28x90xbf16, #tpu.memory_space<vmem>>, vector<28x90xbf16>
    %c0_1 = arith.constant 0 : index
    %c0_2 = arith.constant 0 : index
    %5 = vector.load %arg2[%c0_1, %c0_2] : memref<90x256xbf16, #tpu.memory_space<vmem>>, vector<90x256xbf16>
    %cst = arith.constant dense<0.000000e+00> : vector<28x256xf32>
    %6 = tpu.matmul %4, %5, %cst {dimension_numbers = #tpu.dot_dimension_numbers<[1], [0], [0], [1], [0, 0, 1, 1], [], []>} : vector<28x90xbf16>, vector<90x256xbf16>, vector<28x256xf32> -> vector<28x256xf32>
    %c0_3 = arith.constant 0 : index
    %c0_4 = arith.constant 0 : index
    %7 = vector.load %arg3[%c0_3, %c0_4] : memref<1x256xf32, #tpu.memory_space<vmem>>, vector<1x256xf32>
    %8 = vector.broadcast %7 : vector<1x256xf32> to vector<28x256xf32>
    %9 = arith.addf %6, %8 : vector<28x256xf32>
    %cst_5 = arith.constant 0.000000e+00 : f32
    %10 = vector.broadcast %cst_5 : f32 to vector<28x256xf32>
    %11 = arith.maximumf %9, %10 : vector<28x256xf32>
    %cst_6 = arith.constant 0.000000e+00 : bf16
    %12 = vector.broadcast %cst_6 : bf16 to vector<2x256xbf16>
    %c0_7 = arith.constant 0 : index
    %c0_8 = arith.constant 0 : index
    %13 = vector.load %arg12[%c0_7, %c0_8] : memref<30x256xbf16, #tpu.memory_space<vmem>>, vector<2x256xbf16>
    tpu.vector_store %arg12[%c0_7, %c0_8], %12 {strides = array<i32>} : memref<30x256xbf16, #tpu.memory_space<vmem>>, vector<2x256xbf16>,
    %14 = arith.truncf %11 : vector<28x256xf32> to vector<28x256xbf16>
    %c2 = arith.constant 2 : index
    %c0_9 = arith.constant 0 : index
    %15 = vector.load %arg12[%c2, %c0_9] : memref<30x256xbf16, #tpu.memory_space<vmem>>, vector<28x256xbf16>
    tpu.vector_store %arg12[%c2, %c0_9], %14 {strides = array<i32>} : memref<30x256xbf16, #tpu.memory_space<vmem>>, vector<28x256xbf16>,
    %c0_i32_10 = arith.constant 0 : i32
    %16 = tpu.memref_slice %arg16[%c0_i32_10] : memref<2x!tpu.dma_semaphore, #tpu.memory_space<semaphore_mem>> -> memref<1x!tpu.dma_semaphore, #tpu.memory_space<semaphore_mem>>
    %17 = tpu.memref_squeeze %16 : memref<1x!tpu.dma_semaphore, #tpu.memory_space<semaphore_mem>> -> memref<!tpu.dma_semaphore, #tpu.memory_space<semaphore_mem>>
    tpu.wait_dma2 semaphore(%17 : memref<!tpu.dma_semaphore, #tpu.memory_space<semaphore_mem>>) src(%arg4 : memref<3x256x256xbf16, #tpu.memory_space<any>>) dst(%arg14 : memref<3x256x256xbf16, #tpu.memory_space<vmem>>)
    %c0_11 = arith.constant 0 : index
    %c0_12 = arith.constant 0 : index
    %18 = vector.load %arg12[%c0_11, %c0_12] : memref<30x256xbf16, #tpu.memory_space<vmem>>, vector<14x256xbf16>
    %c0_13 = arith.constant 0 : index
    %c0_14 = arith.constant 0 : index
    %c0_15 = arith.constant 0 : index
    %19 = vector.load %arg14[%c0_13, %c0_14, %c0_15] : memref<3x256x256xbf16, #tpu.memory_space<vmem>>, vector<1x256x256xbf16>
    %20 = vector.shape_cast %19 : vector<1x256x256xbf16> to vector<256x256xbf16>
    %cst_16 = arith.constant dense<0.000000e+00> : vector<14x256xf32>
    %21 = tpu.matmul %18, %20, %cst_16 {dimension_numbers = #tpu.dot_dimension_numbers<[1], [0], [0], [1], [0, 0, 1, 1], [], []>} : vector<14x256xbf16>, vector<256x256xbf16>, vector<14x256xf32> -> vector<14x256xf32>
    %c16 = arith.constant 16 : index
    %c0_17 = arith.constant 0 : index
    %22 = vector.load %arg12[%c16, %c0_17] : memref<30x256xbf16, #tpu.memory_space<vmem>>, vector<14x256xbf16>
    %c1 = arith.constant 1 : index
    %c0_18 = arith.constant 0 : index
    %c0_19 = arith.constant 0 : index
    %23 = vector.load %arg14[%c1, %c0_18, %c0_19] : memref<3x256x256xbf16, #tpu.memory_space<vmem>>, vector<1x256x256xbf16>
    %24 = vector.shape_cast %23 : vector<1x256x256xbf16> to vector<256x256xbf16>
    %cst_20 = arith.constant dense<0.000000e+00> : vector<14x256xf32>
    %25 = tpu.matmul %22, %24, %cst_20 {dimension_numbers = #tpu.dot_dimension_numbers<[1], [0], [0], [1], [0, 0, 1, 1], [], []>} : vector<14x256xbf16>, vector<256x256xbf16>, vector<14x256xf32> -> vector<14x256xf32>
    %26 = arith.addf %21, %25 : vector<14x256xf32>
    %c2_21 = arith.constant 2 : index
    %c0_22 = arith.constant 0 : index
    %27 = vector.load %arg12[%c2_21, %c0_22] : memref<30x256xbf16, #tpu.memory_space<vmem>>, vector<14x256xbf16>
    %c2_23 = arith.constant 2 : index
    %c0_24 = arith.constant 0 : index
    %c0_25 = arith.constant 0 : index
    %28 = vector.load %arg14[%c2_23, %c0_24, %c0_25] : memref<3x256x256xbf16, #tpu.memory_space<vmem>>, vector<1x256x256xbf16>
    %29 = vector.shape_cast %28 : vector<1x256x256xbf16> to vector<256x256xbf16>
    %cst_26 = arith.constant dense<0.000000e+00> : vector<14x256xf32>
    %30 = tpu.matmul %27, %29, %cst_26 {dimension_numbers = #tpu.dot_dimension_numbers<[1], [0], [0], [1], [0, 0, 1, 1], [], []>} : vector<14x256xbf16>, vector<256x256xbf16>, vector<14x256xf32> -> vector<14x256xf32>
    %31 = arith.addf %26, %30 : vector<14x256xf32>
    %c0_27 = arith.constant 0 : index
    %c0_28 = arith.constant 0 : index
    %32 = vector.load %arg5[%c0_27, %c0_28] : memref<1x256xf32, #tpu.memory_space<vmem>>, vector<1x256xf32>
    %33 = vector.broadcast %32 : vector<1x256xf32> to vector<14x256xf32>
    %34 = arith.addf %31, %33 : vector<14x256xf32>
    %cst_29 = arith.constant 0.000000e+00 : f32
    %35 = vector.broadcast %cst_29 : f32 to vector<14x256xf32>
    %36 = arith.maximumf %34, %35 : vector<14x256xf32>
    %37 = arith.truncf %36 : vector<14x256xf32> to vector<14x256xbf16>
    %38 = vector.extract_strided_slice %37 {offsets = [0, 0], sizes = [2, 256], strides = [1, 1]} : vector<14x256xbf16> to vector<2x256xbf16>
    %c0_30 = arith.constant 0 : index
    %c0_31 = arith.constant 0 : index
    %39 = vector.load %arg13[%c0_30, %c0_31] : memref<2x1792xbf16, #tpu.memory_space<vmem>>, vector<2x256xbf16>
    tpu.vector_store %arg13[%c0_30, %c0_31], %38 {strides = array<i32>} : memref<2x1792xbf16, #tpu.memory_space<vmem>>, vector<2x256xbf16>,
    %40 = vector.extract_strided_slice %37 {offsets = [2, 0], sizes = [2, 256], strides = [1, 1]} : vector<14x256xbf16> to vector<2x256xbf16>
    %c0_32 = arith.constant 0 : index
    %c256 = arith.constant 256 : index
    %41 = vector.load %arg13[%c0_32, %c256] : memref<2x1792xbf16, #tpu.memory_space<vmem>>, vector<2x256xbf16>
    tpu.vector_store %arg13[%c0_32, %c256], %40 {strides = array<i32>} : memref<2x1792xbf16, #tpu.memory_space<vmem>>, vector<2x256xbf16>,
    %42 = vector.extract_strided_slice %37 {offsets = [4, 0], sizes = [2, 256], strides = [1, 1]} : vector<14x256xbf16> to vector<2x256xbf16>
    %c0_33 = arith.constant 0 : index
    %c512 = arith.constant 512 : index
    %43 = vector.load %arg13[%c0_33, %c512] : memref<2x1792xbf16, #tpu.memory_space<vmem>>, vector<2x256xbf16>
    tpu.vector_store %arg13[%c0_33, %c512], %42 {strides = array<i32>} : memref<2x1792xbf16, #tpu.memory_space<vmem>>, vector<2x256xbf16>,
    %44 = vector.extract_strided_slice %37 {offsets = [6, 0], sizes = [2, 256], strides = [1, 1]} : vector<14x256xbf16> to vector<2x256xbf16>
    %c0_34 = arith.constant 0 : index
    %c768 = arith.constant 768 : index
    %45 = vector.load %arg13[%c0_34, %c768] : memref<2x1792xbf16, #tpu.memory_space<vmem>>, vector<2x256xbf16>
    tpu.vector_store %arg13[%c0_34, %c768], %44 {strides = array<i32>} : memref<2x1792xbf16, #tpu.memory_space<vmem>>, vector<2x256xbf16>,
    %46 = vector.extract_strided_slice %37 {offsets = [8, 0], sizes = [2, 256], strides = [1, 1]} : vector<14x256xbf16> to vector<2x256xbf16>
    %c0_35 = arith.constant 0 : index
    %c1024 = arith.constant 1024 : index
    %47 = vector.load %arg13[%c0_35, %c1024] : memref<2x1792xbf16, #tpu.memory_space<vmem>>, vector<2x256xbf16>
    tpu.vector_store %arg13[%c0_35, %c1024], %46 {strides = array<i32>} : memref<2x1792xbf16, #tpu.memory_space<vmem>>, vector<2x256xbf16>,
    %48 = vector.extract_strided_slice %37 {offsets = [10, 0], sizes = [2, 256], strides = [1, 1]} : vector<14x256xbf16> to vector<2x256xbf16>
    %c0_36 = arith.constant 0 : index
    %c1280 = arith.constant 1280 : index
    %49 = vector.load %arg13[%c0_36, %c1280] : memref<2x1792xbf16, #tpu.memory_space<vmem>>, vector<2x256xbf16>
    tpu.vector_store %arg13[%c0_36, %c1280], %48 {strides = array<i32>} : memref<2x1792xbf16, #tpu.memory_space<vmem>>, vector<2x256xbf16>,
    %50 = vector.extract_strided_slice %37 {offsets = [12, 0], sizes = [2, 256], strides = [1, 1]} : vector<14x256xbf16> to vector<2x256xbf16>
    %c0_37 = arith.constant 0 : index
    %c1536 = arith.constant 1536 : index
    %51 = vector.load %arg13[%c0_37, %c1536] : memref<2x1792xbf16, #tpu.memory_space<vmem>>, vector<2x256xbf16>
    tpu.vector_store %arg13[%c0_37, %c1536], %50 {strides = array<i32>} : memref<2x1792xbf16, #tpu.memory_space<vmem>>, vector<2x256xbf16>,
    %c1_i32_38 = arith.constant 1 : i32
    %52 = tpu.memref_slice %arg16[%c1_i32_38] : memref<2x!tpu.dma_semaphore, #tpu.memory_space<semaphore_mem>> -> memref<1x!tpu.dma_semaphore, #tpu.memory_space<semaphore_mem>>
    %53 = tpu.memref_squeeze %52 : memref<1x!tpu.dma_semaphore, #tpu.memory_space<semaphore_mem>> -> memref<!tpu.dma_semaphore, #tpu.memory_space<semaphore_mem>>
    tpu.wait_dma2 semaphore(%53 : memref<!tpu.dma_semaphore, #tpu.memory_space<semaphore_mem>>) src(%arg6 : memref<1792x128xbf16, #tpu.memory_space<any>>) dst(%arg15 : memref<1792x128xbf16, #tpu.memory_space<vmem>>)
    %c0_39 = arith.constant 0 : index
    %c0_40 = arith.constant 0 : index
    %54 = vector.load %arg13[%c0_39, %c0_40] : memref<2x1792xbf16, #tpu.memory_space<vmem>>, vector<2x1792xbf16>
    %c0_41 = arith.constant 0 : index
    %c0_42 = arith.constant 0 : index
    %55 = vector.load %arg15[%c0_41, %c0_42] : memref<1792x128xbf16, #tpu.memory_space<vmem>>, vector<1792x128xbf16>
    %cst_43 = arith.constant dense<0.000000e+00> : vector<2x128xf32>
    %56 = tpu.matmul %54, %55, %cst_43 {dimension_numbers = #tpu.dot_dimension_numbers<[1], [0], [0], [1], [0, 0, 1, 1], [], []>} : vector<2x1792xbf16>, vector<1792x128xbf16>, vector<2x128xf32> -> vector<2x128xf32>
    %c0_44 = arith.constant 0 : index
    %c0_45 = arith.constant 0 : index
    %57 = vector.load %arg7[%c0_44, %c0_45] : memref<1x128xf32, #tpu.memory_space<vmem>>, vector<1x128xf32>
    %58 = vector.broadcast %57 : vector<1x128xf32> to vector<2x128xf32>
    %59 = arith.addf %56, %58 : vector<2x128xf32>
    %cst_46 = arith.constant 0.000000e+00 : f32
    %60 = vector.broadcast %cst_46 : f32 to vector<2x128xf32>
    %61 = arith.maximumf %59, %60 : vector<2x128xf32>
    %62 = arith.truncf %61 : vector<2x128xf32> to vector<2x128xbf16>
    %c0_47 = arith.constant 0 : index
    %c0_48 = arith.constant 0 : index
    %63 = vector.load %arg8[%c0_47, %c0_48] : memref<128x32xbf16, #tpu.memory_space<vmem>>, vector<128x32xbf16>
    %cst_49 = arith.constant dense<0.000000e+00> : vector<2x32xf32>
    %64 = tpu.matmul %62, %63, %cst_49 {dimension_numbers = #tpu.dot_dimension_numbers<[1], [0], [0], [1], [0, 0, 1, 1], [], []>} : vector<2x128xbf16>, vector<128x32xbf16>, vector<2x32xf32> -> vector<2x32xf32>
    %c0_50 = arith.constant 0 : index
    %c0_51 = arith.constant 0 : index
    %65 = vector.load %arg9[%c0_50, %c0_51] : memref<1x32xf32, #tpu.memory_space<vmem>>, vector<1x32xf32>
    %66 = vector.broadcast %65 : vector<1x32xf32> to vector<2x32xf32>
    %67 = arith.addf %64, %66 : vector<2x32xf32>
    %68 = vector.extract_strided_slice %67 {offsets = [0, 0], sizes = [2, 16], strides = [1, 1]} : vector<2x32xf32> to vector<2x16xf32>
    %69 = vector.extract_strided_slice %67 {offsets = [0, 16], sizes = [2, 16], strides = [1, 1]} : vector<2x32xf32> to vector<2x16xf32>
    %c0_52 = arith.constant 0 : index
    %c0_53 = arith.constant 0 : index
    %70 = vector.load %arg10[%c0_52, %c0_53] : memref<2x16xf32, #tpu.memory_space<vmem>>, vector<2x16xf32>
    %cst_54 = arith.constant 5.000000e-01 : f32
    %71 = vector.broadcast %cst_54 : f32 to vector<2x16xf32>
    %72 = arith.mulf %71, %69 : vector<2x16xf32>
    %73 = math.exp %72 : vector<2x16xf32>
    %74 = arith.mulf %70, %73 : vector<2x16xf32>
    %75 = arith.addf %68, %74 : vector<2x16xf32>
    %c0_55 = arith.constant 0 : index
    %c0_56 = arith.constant 0 : index
    %76 = vector.load %arg11[%c0_55, %c0_56] : memref<2x16xf32, #tpu.memory_space<vmem>>, vector<2x16xf32>
    tpu.vector_store %arg11[%c0_55, %c0_56], %75 {strides = array<i32>} : memref<2x16xf32, #tpu.memory_space<vmem>>, vector<2x16xf32>,
    return
  }
  func.func @transform_0(%arg0: i32) -> (i32, i32) {
    %c0_i32 = arith.constant 0 : i32
    %c0_i32_0 = arith.constant 0 : i32
    %c0_i32_1 = arith.constant 0 : i32
    return %c0_i32, %c0_i32_0 : i32, i32
  }
  func.func @transform_1(%arg0: i32) -> (i32, i32) {
    %c0_i32 = arith.constant 0 : i32
    %c0_i32_0 = arith.constant 0 : i32
    %c0_i32_1 = arith.constant 0 : i32
    return %c0_i32, %c0_i32_0 : i32, i32
  }
  func.func @transform_2(%arg0: i32) -> (i32, i32) {
    %c0_i32 = arith.constant 0 : i32
    %c0_i32_0 = arith.constant 0 : i32
    %c0_i32_1 = arith.constant 0 : i32
    return %c0_i32, %c0_i32_0 : i32, i32
  }
  func.func @transform_4(%arg0: i32) -> (i32, i32) {
    %c0_i32 = arith.constant 0 : i32
    %c0_i32_0 = arith.constant 0 : i32
    %c0_i32_1 = arith.constant 0 : i32
    return %c0_i32, %c0_i32_0 : i32, i32
  }
  func.func @transform_6(%arg0: i32) -> (i32, i32) {
    %c0_i32 = arith.constant 0 : i32
    %c0_i32_0 = arith.constant 0 : i32
    %c0_i32_1 = arith.constant 0 : i32
    return %c0_i32, %c0_i32_0 : i32, i32
  }
  func.func @transform_7(%arg0: i32) -> (i32, i32) {
    %c0_i32 = arith.constant 0 : i32
    %c0_i32_0 = arith.constant 0 : i32
    %c0_i32_1 = arith.constant 0 : i32
    return %c0_i32, %c0_i32_0 : i32, i32
  }
  func.func @transform_8(%arg0: i32) -> (i32, i32) {
    %c0_i32 = arith.constant 0 : i32
    %c0_i32_0 = arith.constant 0 : i32
    %c0_i32_1 = arith.constant 0 : i32
    return %c0_i32, %c0_i32_0 : i32, i32
  }
  func.func @transform_9(%arg0: i32) -> (i32, i32) {
    %c0_i32 = arith.constant 0 : i32
    %c0_i32_0 = arith.constant 0 : i32
    %c0_i32_1 = arith.constant 0 : i32
    return %c0_i32, %c0_i32_0 : i32, i32
  }
  func.func @transform_10(%arg0: i32) -> (i32, i32) {
    %c0_i32 = arith.constant 0 : i32
    %c0_i32_0 = arith.constant 0 : i32
    %c0_i32_1 = arith.constant 0 : i32
    return %c0_i32, %c0_i32_0 : i32, i32
  }
}

</mosaic_0001>

<llo_original>
// kernel: encoder_forward.1
$region0: #{encoder_forward.1}
  #allocation0 [shape = 'u32[]', space=smem, size = 0x4, offset = 0x4, fixed_abs, tag = 'smem constant byte address 0x4 - core index']
  #allocation1 [shape = 'u32[144,128]{1,0:T(1,128)}', space=vmem, size = 0x12000, scoped, tag = 'internal scratch']
  #allocation2 [shape = 'bf16[30,256]{1,0:T(8,128)(2,1)}', space=vmem, size = 0x4000, scoped, tag = 'scratch operand']
  #allocation3 [shape = 'bf16[2,1792]{1,0:T(2,128)(2,1)}', space=vmem, size = 0x1c00, scoped, tag = 'scratch operand']
  #allocation4 [shape = 'bf16[3,256,256]{2,1,0:T(16,128)(2,1)}', space=vmem, size = 0x60000, scoped, tag = 'scratch operand']
  #allocation5 [shape = 'bf16[1792,128]{1,0:T(16,128)(2,1)}', space=vmem, size = 0x70000, scoped, tag = 'scratch operand']
  #allocation6 [shape = 's32[2]{0}', space=sflag, size = 0x8, scoped, tag = 'scratch operand']
  #allocation9 [shape = 's32[]', space=sflag, size = 0x4, offset = 0, fixed_abs, tag = 'sflag constant byte address 0x0 - dummy sync flag']
  #allocation11 [shape = 's32[]', space=sflag, size = 0x4, offset = 0, fixed_abs, tag = 'sflag constant byte address 0x0 - dummy sync flag']
  #allocation12 [shape = 's32[]', space=sflag, size = 0x4, offset = 0, fixed_abs, tag = 'sflag constant byte address 0x0 - dummy sync flag']
  #allocation13 [shape = 'u32[]', space=smem, size = 0x4, offset = 0x44, fixed_abs, tag = 'smem constant byte address 0x44 - assertion arg 0']
  #allocation14 [shape = 'u32[]', space=smem, size = 0x4, offset = 0x48, fixed_abs, tag = 'smem constant byte address 0x48 - assertion arg 1']
  %s0 = inlined_call_operand.vmem [shape: bf16[28,90], index: 0, kind: input, shape index: {}]
  %s1 = inlined_call_operand.vmem [shape: bf16[90,256], index: 1, kind: input, shape index: {}]
  %s2 = inlined_call_operand.vmem [shape: f32[1,256], index: 2, kind: input, shape index: {}]
  %s3 = inlined_call_operand.hbm [shape: bf16[3,256,256], index: 3, kind: input, shape index: {}]
  %s4 = inlined_call_operand.vmem [shape: f32[1,256], index: 4, kind: input, shape index: {}]
  %s5 = inlined_call_operand.hbm [shape: bf16[1792,128], index: 5, kind: input, shape index: {}]
  %s6 = inlined_call_operand.vmem [shape: f32[1,128], index: 6, kind: input, shape index: {}]
  %s7 = inlined_call_operand.vmem [shape: bf16[128,32], index: 7, kind: input, shape index: {}]
  %s8 = inlined_call_operand.vmem [shape: f32[1,32], index: 8, kind: input, shape index: {}]
  %s9 = inlined_call_operand.vmem [shape: f32[2,16], index: 9, kind: input, shape index: {}]
  %s10 = inlined_call_operand.hbm [shape: f32[2,16], index: 10, kind: output, shape index: {}]
  %s11 = sld [smem:[#allocation0]]
  $region46: #{encoder_forward.1} parent=0
    _
  %s13 = ssub.s32 1, %s11
  %s14 = scalar_select 0, %s13, %s11
  $region1: #{encoder_forward.1} parent=0
    #allocation7 [shape = 'u8[1024]{0}', space=vmem, size = 0x400, scoped, tag = 'output window, operand 0, single buffered']
    #allocation8 [shape = 's32[1]{0}', space=sflag, size = 0x4, scoped, tag = 'scoped memory for encoder_forward.1']
    #allocation10 [shape = 'u32[9]{0}', space=smem, size = 0x24, scoped, tag = 'DMA stride descriptor']
    %15 = vsyncpa [#allocation8], 0
    // Predicated region
    $region2: #{encoder_forward.1} parent=1 // pred_check
      _
    $region3: #{encoder_forward.1} parent=1 // pred_check_branch
      %17 = sbr.rel (0) target = $region5
    $region4: #{encoder_forward.1} parent=1 // pred_region
      _
    $region5: #{encoder_forward.1} parent=1 // pred_fallthru
      _
    // Predicated region
    $region6: #{encoder_forward.1} parent=1 // pred_check
      _
    $region7: #{encoder_forward.1} parent=1 // pred_check_branch
      %19 = sbr.rel (0) target = $region9
    $region8: #{encoder_forward.1} parent=1 // pred_region
      _
    $region9: #{encoder_forward.1} parent=1 // pred_fallthru
      _
    // Predicated region
    $region10: #{encoder_forward.1} parent=1 // pred_check
      _
    $region11: #{encoder_forward.1} parent=1 // pred_check_branch
      %21 = sbr.rel (0) target = $region13
    $region12: #{encoder_forward.1} parent=1 // pred_region
      _
    $region13: #{encoder_forward.1} parent=1 // pred_fallthru
      _
    // Predicated region
    $region14: #{encoder_forward.1} parent=1 // pred_check
      _
    $region15: #{encoder_forward.1} parent=1 // pred_check_branch
      %23 = sbr.rel (0) target = $region17
    $region16: #{encoder_forward.1} parent=1 // pred_region
      _
    $region17: #{encoder_forward.1} parent=1 // pred_fallthru
      _
    // Predicated region
    $region18: #{encoder_forward.1} parent=1 // pred_check
      _
    $region19: #{encoder_forward.1} parent=1 // pred_check_branch
      %25 = sbr.rel (0) target = $region21
    $region20: #{encoder_forward.1} parent=1 // pred_region
      _
    $region21: #{encoder_forward.1} parent=1 // pred_fallthru
      _
    // Predicated region
    $region22: #{encoder_forward.1} parent=1 // pred_check
      _
    $region23: #{encoder_forward.1} parent=1 // pred_check_branch
      %27 = sbr.rel (0) target = $region25
    $region24: #{encoder_forward.1} parent=1 // pred_region
      _
    $region25: #{encoder_forward.1} parent=1 // pred_fallthru
      _
    // Predicated region
    $region26: #{encoder_forward.1} parent=1 // pred_check
      _
    $region27: #{encoder_forward.1} parent=1 // pred_check_branch
      %29 = sbr.rel (0) target = $region29
    $region28: #{encoder_forward.1} parent=1 // pred_region
      _
    $region29: #{encoder_forward.1} parent=1 // pred_fallthru
      _
    // Predicated region
    $region30: #{encoder_forward.1} parent=1 // pred_check
      _
    $region31: #{encoder_forward.1} parent=1 // pred_check_branch
      %31 = sbr.rel (0) target = $region33
    $region32: #{encoder_forward.1} parent=1 // pred_region
      _
    $region33: #{encoder_forward.1} parent=1 // pred_fallthru
      _
    %s34 = sshll.u32 1, 14
    %s35 = sxor.u32 4294967295, %s34
    %s37 = sld [smem:[#allocation0]]
    %s38 = sadd.s32 2, %s37
    %s40 = sshll.u32 7, 26
    %s41 = sxor.u32 4294967295, %s40
    %s42 = sand.u32 0, %s41
    %s43 = sshll.u32 %s38, 26
    %s44 = sor.u32 %s42, %s43
    %s45 = sshll.u32 [#allocation4], 4
    %s46 = int_to_ptr.vmem [resolvable:$true] %s45
    %49 = sst [smem:[#allocation10]] 256
    %s50 = scalar_lea.smem [#allocation10], 1
    %51 = sst [smem:[%s50]] 256
    %s52 = scalar_lea.smem [#allocation10], 2
    %53 = sst [smem:[%s52]] 2
    %s54 = scalar_lea.smem [#allocation10], 3
    %55 = sst [smem:[%s54]] 64
    %s56 = scalar_lea.smem [#allocation10], 4
    %57 = sst [smem:[%s56]] 128
    %s58 = scalar_lea.smem [#allocation10], 5
    %59 = sst [smem:[%s58]] 2
    %s60 = scalar_lea.smem [#allocation10], 6
    %61 = sst [smem:[%s60]] 128
    %s62 = scalar_lea.smem [#allocation10], 7
    %63 = sst [smem:[%s62]] 64
    %s64 = scalar_lea.smem [#allocation10], 8
    %65 = sst [smem:[%s64]] 4
    %67 = dma.general %s3, 12288, %s46, [#allocation6], [#allocation9], [#allocation10], %s44, 0
    %s68 = scalar_lea.sflag [#allocation6], 1
    // Predicated region
    $region34: #{encoder_forward.1} parent=1 // pred_check
      _
    $region35: #{encoder_forward.1} parent=1 // pred_check_branch
      %70 = sbr.rel target = $region37
    $region36: #{encoder_forward.1} parent=1 // pred_region
      %71 = sst [smem:[#allocation13]] [#allocation12]
      %72 = sst [smem:[#allocation14]] [#allocation11]
    $region37: #{encoder_forward.1} parent=1 // pred_fallthru
      _
    %74 = shalt.err (0)
    %s76 = sshll.u32 [#allocation5], 4
    %s77 = int_to_ptr.vmem [resolvable:$true] %s76
    %79 = dma.hbm_to_vmem [thread:$0]  %s5, 14336, %s77, %s68
    %v80 = vld [vmem:[%s0] sm:$0xf]
    %v81 = vld [vmem:[%s0 + $0x4] sm:$0xf]
    %v82 = vld [vmem:[%s0 + $0x8] sm:$0xf]
    %v83 = vld [vmem:[%s0 + $0xc] sm:$0x3]
    %v84 = vld [vmem:[%s1] sm:$0xff]
    %v85 = vld [vmem:[%s1 + $0x8] sm:$0xff]
    %v86 = vld [vmem:[%s1 + $0x10] sm:$0xff]
    %v87 = vld [vmem:[%s1 + $0x18] sm:$0xff]
    %v88 = vld [vmem:[%s1 + $0x20] sm:$0xff]
    %v89 = vld [vmem:[%s1 + $0x28] sm:$0xff]
    %v90 = vld [vmem:[%s1 + $0x30] sm:$0xff]
    %v91 = vld [vmem:[%s1 + $0x38] sm:$0xff]
    %v92 = vld [vmem:[%s1 + $0x40] sm:$0xff]
    %v93 = vld [vmem:[%s1 + $0x48] sm:$0xff]
    %v94 = vld [vmem:[%s1 + $0x50] sm:$0xff]
    %v95 = vld [vmem:[%s1 + $0x58] sm:$0x11]
    %v96 = vld [vmem:[%s2] sm:$0x3]
    %v98 = vlaneseq
    %v99 = vshrl.u32 %v98, 7
    %v100 = vsub.s32 0, %v99
    %v101 = vrot.slane %v96, %v100
    %v102 = vlaneseq
    %v103 = vshrl.u32 %v102, 7
    %v104 = vsub.s32 1, %v103
    %v105 = vrot.slane %v96, %v104
    %v112 = vunpack.c.l.b16 %v80
    %v113 = vunpack.c.l.b16 %v81
    %v114 = vunpack.c.l.b16 %v82
    %v115 = vunpack.c.l.b16 %v83
    %v116 = vpack.c.b16 %v113, %v112
    %v117 = vpack.c.b16 %v115, %v114
    %v130 = vunpack.c.l.b16 %v84
    %v131 = vunpack.c.h.b16 %v84
    %v132 = vunpack.c.l.b16 %v85
    %v133 = vunpack.c.h.b16 %v85
    %v134 = vunpack.c.l.b16 %v86
    %v135 = vunpack.c.h.b16 %v86
    %v136 = vunpack.c.l.b16 %v87
    %v137 = vunpack.c.h.b16 %v87
    %v138 = vunpack.c.l.b16 %v88
    %v139 = vunpack.c.h.b16 %v88
    %v140 = vunpack.c.l.b16 %v89
    %v141 = vunpack.c.h.b16 %v89
    %v142 = vunpack.c.l.b16 %v90
    %v143 = vunpack.c.h.b16 %v90
    %v144 = vunpack.c.l.b16 %v91
    %v145 = vunpack.c.h.b16 %v91
    %v146 = vunpack.c.l.b16 %v92
    %v147 = vunpack.c.h.b16 %v92
    %v148 = vunpack.c.l.b16 %v93
    %v149 = vunpack.c.h.b16 %v93
    %v150 = vunpack.c.l.b16 %v94
    %v151 = vunpack.c.h.b16 %v94
    %v152 = vunpack.c.l.b16 %v95
    %v153 = vunpack.c.h.b16 %v95
    %v154 = vpack.c.b16 %v132, %v130
    %v155 = vpack.c.b16 %v133, %v131
    %v156 = vpack.c.b16 %v136, %v134
    %v157 = vpack.c.b16 %v137, %v135
    %v158 = vpack.c.b16 %v140, %v138
    %v159 = vpack.c.b16 %v141, %v139
    %v160 = vpack.c.b16 %v144, %v142
    %v161 = vpack.c.b16 %v145, %v143
    %v162 = vpack.c.b16 %v148, %v146
    %v163 = vpack.c.b16 %v149, %v147
    %v164 = vpack.c.b16 %v152, %v150
    %v165 = vpack.c.b16 %v153, %v151
    %vm176 = vcmask 736256
    %v178 = vsel %vm176, %v116, 0
    %v181 = vsel %vm176, %v117, 0
    %vm183 = vcmask 1044480
    %v185 = vsel %vm183, %v164, 0
    %v188 = vsel %vm183, %v165, 0
    %190 = vmatprep.subr.bf16.mxu0 %v155
    %191 = vmatpush1.bf16.msra.mxu0 %v154
    %192 = vmatprep.subr.bf16.mxu0 %v157
    %193 = vmatpush1.bf16.msra.mxu0 %v156
    %194 = vmatprep.subr.bf16.mxu0 %v159
    %195 = vmatpush1.bf16.msra.mxu0 %v158
    %196 = vmatprep.subr.bf16.mxu0 %v161
    %197 = vmatpush1.bf16.msra.mxu0 %v160
    %198 = vmatprep.subr.bf16.mxu0 %v163
    %199 = vmatpush1.bf16.msra.mxu0 %v162
    %200 = vmatprep.subr.bf16.mxu0 %v188
    %201 = vmatpush1.bf16.msra.mxu0 %v185
    %202 = vmatprep.subr.bf16.mxu0 0
    %203 = vmatpush1.bf16.msra.mxu0 0
    %204 = vmatprep.subr.bf16.mxu0 0
    %205 = vmatpush1.bf16.msra.mxu0 0
    %206 = vmatprep.subr.bf16.mxu0 0
    %207 = vmatpush1.bf16.msra.mxu0 0
    %208 = vmatprep.subr.bf16.mxu0 0
    %209 = vmatpush1.bf16.msra.mxu0 0
    %210 = vmatprep.subr.bf16.mxu0 0
    %211 = vmatpush1.bf16.msra.mxu0 0
    %212 = vmatprep.subr.bf16.mxu0 0
    %213 = vmatpush1.bf16.msra.mxu0 0
    %214 = vmatprep.subr.bf16.mxu0 0
    %215 = vmatpush1.bf16.msra.mxu0 0
    %216 = vmatprep.subr.bf16.mxu0 0
    %217 = vmatpush1.bf16.msra.mxu0 0
    %218 = vmatprep.subr.bf16.mxu0 0
    %219 = vmatpush1.bf16.msra.mxu0 0
    %220 = vmatprep.subr.bf16.mxu0 0
    %221 = vmatpush1.bf16.msra.mxu0 0
    %222 = vmatprep.mubr.bf16.mxu0 0
    %223 = vmatmul.mubr.bf16.gmra.mrb[0].mxu0 %v178
    %v224 = vpop.f32.mrb[0].mxu0
    %v225 = vadd.f32 %v101, %v224
    %v226 = vpop.f32.mrb[0].mxu0
    %v227 = vadd.f32 %v105, %v226
    %v228 = vpop.f32.mrb[0].mxu0
    %v229 = vadd.f32 %v101, %v228
    %v230 = vpop.f32.mrb[0].mxu0
    %v231 = vadd.f32 %v105, %v230
    %232 = vmatprep.mubr.bf16.mxu0 0
    %233 = vmatmul.mubr.bf16.gmra.mrb[0].mxu0 %v181
    %v234 = vpop.f32.mrb[0].mxu0
    %v235 = vadd.f32 %v101, %v234
    %v236 = vpop.f32.mrb[0].mxu0
    %v237 = vadd.f32 %v105, %v236
    %v238 = vpop.f32.mrb[0].mxu0
    %v239 = vadd.f32 %v101, %v238
    %v240 = vpop.f32.mrb[0].mxu0
    %v241 = vadd.f32 %v105, %v240
    %242 = vdwg.mxu0
    %v243 = vmax.f32 %v225, 0.0
    %v244 = vmax.f32 %v227, 0.0
    %v245 = vmax.f32 %v229, 0.0
    %v246 = vmax.f32 %v231, 0.0
    %v247 = vmax.f32 %v235, 0.0
    %v248 = vmax.f32 %v237, 0.0
    %v249 = vmax.f32 %v239, 0.0
    %v250 = vmax.f32 %v241, 0.0
    %251 = vst [vmem:[#allocation2] sm:$0x11] 0
    %v252 = vpack.c.bf16 %v245, %v243
    %v253 = vpack.c.bf16 %v246, %v244
    %v254 = vpack.c.bf16 %v249, %v247
    %v255 = vpack.c.bf16 %v250, %v248
    %v260 = vunpack.c.l.b16 %v252
    %v261 = vunpack.c.l.b16 %v253
    %v262 = vunpack.c.h.b16 %v252
    %v263 = vunpack.c.h.b16 %v253
    %v264 = vunpack.c.l.b16 %v254
    %v265 = vunpack.c.l.b16 %v255
    %v266 = vunpack.c.h.b16 %v254
    %v267 = vunpack.c.h.b16 %v255
    %v268 = vpack.c.b16 %v261, %v260
    %v269 = vpack.c.b16 %v263, %v262
    %v270 = vpack.c.b16 %v265, %v264
    %v271 = vpack.c.b16 %v267, %v266
    %vm272 = vcmask 1040384
    %vm273 = vcmask 1044484
    %vm274 = vmor %vm272, %vm273
    %v275 = vrot.slane %v268, 7
    %v276 = vrot.slane %v275, 4
    %v277 = vrot.slane %v269, 7
    %v278 = vsel %vm274, %v276, %v277
    %v279 = vrot.slane %v277, 4
    %v280 = vrot.slane %v270, 7
    %v281 = vsel %vm274, %v279, %v280
    %v282 = vrot.slane %v280, 4
    %v283 = vrot.slane %v271, 7
    %v284 = vsel %vm274, %v282, %v283
    %289 = vst [vmem:[#allocation2] sm:$0xee] %v275
    %290 = vst [vmem:[#allocation2 + $0x8] sm:$0xff] %v278
    %291 = vst [vmem:[#allocation2 + $0x10] sm:$0xff] %v281
    %292 = vst [vmem:[#allocation2 + $0x18] sm:$0x77] %v284
    %s293 = smul.u32 4, 3
    %s294 = smul.u32 %s293, 32
    %s295 = smul.u32 %s294, 2
    %s296 = sshll.u32 %s295, 4
    %297 = dma.done [#allocation6], %s296
    %v298 = vld [vmem:[#allocation2] sm:$0xff]
    %v299 = vld [vmem:[#allocation2 + $0x8] sm:$0x77]
    %v300 = vld [vmem:[#allocation4] sm:$0xff]
    %v301 = vld [vmem:[#allocation4 + $0x8] sm:$0xff]
    %v302 = vld [vmem:[#allocation4 + $0x10] sm:$0xff]
    %v303 = vld [vmem:[#allocation4 + $0x18] sm:$0xff]
    %v304 = vld [vmem:[#allocation4 + $0x20] sm:$0xff]
    %v305 = vld [vmem:[#allocation4 + $0x28] sm:$0xff]
    %v306 = vld [vmem:[#allocation4 + $0x30] sm:$0xff]
    %v307 = vld [vmem:[#allocation4 + $0x38] sm:$0xff]
    %v308 = vld [vmem:[#allocation4 + $0x40] sm:$0xff]
    %v309 = vld [vmem:[#allocation4 + $0x48] sm:$0xff]
    %v310 = vld [vmem:[#allocation4 + $0x50] sm:$0xff]
    %v311 = vld [vmem:[#allocation4 + $0x58] sm:$0xff]
    %v312 = vld [vmem:[#allocation4 + $0x60] sm:$0xff]
    %v313 = vld [vmem:[#allocation4 + $0x68] sm:$0xff]
    %v314 = vld [vmem:[#allocation4 + $0x70] sm:$0xff]
    %v315 = vld [vmem:[#allocation4 + $0x78] sm:$0xff]
    %v316 = vld [vmem:[#allocation4 + $0x80] sm:$0xff]
    %v317 = vld [vmem:[#allocation4 + $0x88] sm:$0xff]
    %v318 = vld [vmem:[#allocation4 + $0x90] sm:$0xff]
    %v319 = vld [vmem:[#allocation4 + $0x98] sm:$0xff]
    %v320 = vld [vmem:[#allocation4 + $0xa0] sm:$0xff]
    %v321 = vld [vmem:[#allocation4 + $0xa8] sm:$0xff]
    %v322 = vld [vmem:[#allocation4 + $0xb0] sm:$0xff]
    %v323 = vld [vmem:[#allocation4 + $0xb8] sm:$0xff]
    %v324 = vld [vmem:[#allocation4 + $0xc0] sm:$0xff]
    %v325 = vld [vmem:[#allocation4 + $0xc8] sm:$0xff]
    %v326 = vld [vmem:[#allocation4 + $0xd0] sm:$0xff]
    %v327 = vld [vmem:[#allocation4 + $0xd8] sm:$0xff]
    %v328 = vld [vmem:[#allocation4 + $0xe0] sm:$0xff]
    %v329 = vld [vmem:[#allocation4 + $0xe8] sm:$0xff]
    %v330 = vld [vmem:[#allocation4 + $0xf0] sm:$0xff]
    %v331 = vld [vmem:[#allocation4 + $0xf8] sm:$0xff]
    %v332 = vld [vmem:[#allocation2 + $0x10] sm:$0xff]
    %v333 = vld [vmem:[#allocation2 + $0x18] sm:$0x77]
    %s334 = scalar_lea.vmem [#allocation4], 256
    %v335 = vld [vmem:[%s334] sm:$0xff]
    %v336 = vld [vmem:[%s334 + $0x8] sm:$0xff]
    %v337 = vld [vmem:[%s334 + $0x10] sm:$0xff]
    %v338 = vld [vmem:[%s334 + $0x18] sm:$0xff]
    %v339 = vld [vmem:[%s334 + $0x20] sm:$0xff]
    %v340 = vld [vmem:[%s334 + $0x28] sm:$0xff]
    %v341 = vld [vmem:[%s334 + $0x30] sm:$0xff]
    %v342 = vld [vmem:[%s334 + $0x38] sm:$0xff]
    %v343 = vld [vmem:[%s334 + $0x40] sm:$0xff]
    %v344 = vld [vmem:[%s334 + $0x48] sm:$0xff]
    %v345 = vld [vmem:[%s334 + $0x50] sm:$0xff]
    %v346 = vld [vmem:[%s334 + $0x58] sm:$0xff]
    %v347 = vld [vmem:[%s334 + $0x60] sm:$0xff]
    %v348 = vld [vmem:[%s334 + $0x68] sm:$0xff]
    %v349 = vld [vmem:[%s334 + $0x70] sm:$0xff]
    %v350 = vld [vmem:[%s334 + $0x78] sm:$0xff]
    %v351 = vld [vmem:[%s334 + $0x80] sm:$0xff]
    %v352 = vld [vmem:[%s334 + $0x88] sm:$0xff]
    %v353 = vld [vmem:[%s334 + $0x90] sm:$0xff]
    %v354 = vld [vmem:[%s334 + $0x98] sm:$0xff]
    %v355 = vld [vmem:[%s334 + $0xa0] sm:$0xff]
    %v356 = vld [vmem:[%s334 + $0xa8] sm:$0xff]
    %v357 = vld [vmem:[%s334 + $0xb0] sm:$0xff]
    %v358 = vld [vmem:[%s334 + $0xb8] sm:$0xff]
    %v359 = vld [vmem:[%s334 + $0xc0] sm:$0xff]
    %v360 = vld [vmem:[%s334 + $0xc8] sm:$0xff]
    %v361 = vld [vmem:[%s334 + $0xd0] sm:$0xff]
    %v362 = vld [vmem:[%s334 + $0xd8] sm:$0xff]
    %v363 = vld [vmem:[%s334 + $0xe0] sm:$0xff]
    %v364 = vld [vmem:[%s334 + $0xe8] sm:$0xff]
    %v365 = vld [vmem:[%s334 + $0xf0] sm:$0xff]
    %v366 = vld [vmem:[%s334 + $0xf8] sm:$0xff]
    %v369 = vunpack.c.l.b16 %v332
    %v370 = vunpack.c.h.b16 %v332
    %v371 = vunpack.c.l.b16 %v333
    %v372 = vunpack.c.h.b16 %v333
    %v373 = vpack.c.b16 %v371, %v369
    %v374 = vpack.c.b16 %v372, %v370
    %377 = vmatprep.subr.bf16.mxu0 %v336
    %378 = vmatpush1.bf16.msra.mxu0 %v335
    %379 = vmatprep.subr.bf16.mxu0 %v338
    %380 = vmatpush1.bf16.msra.mxu0 %v337
    %381 = vmatprep.subr.bf16.mxu0 %v340
    %382 = vmatpush1.bf16.msra.mxu0 %v339
    %383 = vmatprep.subr.bf16.mxu0 %v342
    %384 = vmatpush1.bf16.msra.mxu0 %v341
    %385 = vmatprep.subr.bf16.mxu0 %v344
    %386 = vmatpush1.bf16.msra.mxu0 %v343
    %387 = vmatprep.subr.bf16.mxu0 %v346
    %388 = vmatpush1.bf16.msra.mxu0 %v345
    %389 = vmatprep.subr.bf16.mxu0 %v348
    %390 = vmatpush1.bf16.msra.mxu0 %v347
    %391 = vmatprep.subr.bf16.mxu0 %v350
    %392 = vmatpush1.bf16.msra.mxu0 %v349
    %393 = vmatprep.subr.bf16.mxu0 %v352
    %394 = vmatpush1.bf16.msra.mxu0 %v351
    %395 = vmatprep.subr.bf16.mxu0 %v354
    %396 = vmatpush1.bf16.msra.mxu0 %v353
    %397 = vmatprep.subr.bf16.mxu0 %v356
    %398 = vmatpush1.bf16.msra.mxu0 %v355
    %399 = vmatprep.subr.bf16.mxu0 %v358
    %400 = vmatpush1.bf16.msra.mxu0 %v357
    %401 = vmatprep.subr.bf16.mxu0 %v360
    %402 = vmatpush1.bf16.msra.mxu0 %v359
    %403 = vmatprep.subr.bf16.mxu0 %v362
    %404 = vmatpush1.bf16.msra.mxu0 %v361
    %405 = vmatprep.subr.bf16.mxu0 %v364
    %406 = vmatpush1.bf16.msra.mxu0 %v363
    %407 = vmatprep.subr.bf16.mxu0 %v366
    %408 = vmatpush1.bf16.msra.mxu0 %v365
    %409 = vmatprep.mubr.bf16.mxu0 %v374
    %410 = vmatmul.mubr.bf16.gmra.mrb[0].mxu0 %v373
    %v411 = vpop.f32.mrb[0].mxu0
    %v412 = vadd.f32 0.0, %v411
    %v413 = vpop.f32.mrb[0].mxu0
    %v414 = vadd.f32 0.0, %v413
    %v415 = vpop.f32.mrb[0].mxu0
    %v416 = vadd.f32 0.0, %v415
    %v417 = vpop.f32.mrb[0].mxu0
    %v418 = vadd.f32 0.0, %v417
    %419 = vdwg.mxu0
    %v422 = vunpack.c.l.b16 %v298
    %v423 = vunpack.c.h.b16 %v298
    %v424 = vunpack.c.l.b16 %v299
    %v425 = vunpack.c.h.b16 %v299
    %v426 = vpack.c.b16 %v424, %v422
    %v427 = vpack.c.b16 %v425, %v423
    %430 = vmatprep.subr.bf16.mxu0 %v301
    %431 = vmatpush1.bf16.msra.mxu0 %v300
    %432 = vmatprep.subr.bf16.mxu0 %v303
    %433 = vmatpush1.bf16.msra.mxu0 %v302
    %434 = vmatprep.subr.bf16.mxu0 %v305
    %435 = vmatpush1.bf16.msra.mxu0 %v304
    %436 = vmatprep.subr.bf16.mxu0 %v307
    %437 = vmatpush1.bf16.msra.mxu0 %v306
    %438 = vmatprep.subr.bf16.mxu0 %v309
    %439 = vmatpush1.bf16.msra.mxu0 %v308
    %440 = vmatprep.subr.bf16.mxu0 %v311
    %441 = vmatpush1.bf16.msra.mxu0 %v310
    %442 = vmatprep.subr.bf16.mxu0 %v313
    %443 = vmatpush1.bf16.msra.mxu0 %v312
    %444 = vmatprep.subr.bf16.mxu0 %v315
    %445 = vmatpush1.bf16.msra.mxu0 %v314
    %446 = vmatprep.subr.bf16.mxu0 %v317
    %447 = vmatpush1.bf16.msra.mxu0 %v316
    %448 = vmatprep.subr.bf16.mxu0 %v319
    %449 = vmatpush1.bf16.msra.mxu0 %v318
    %450 = vmatprep.subr.bf16.mxu0 %v321
    %451 = vmatpush1.bf16.msra.mxu0 %v320
    %452 = vmatprep.subr.bf16.mxu0 %v323
    %453 = vmatpush1.bf16.msra.mxu0 %v322
    %454 = vmatprep.subr.bf16.mxu0 %v325
    %455 = vmatpush1.bf16.msra.mxu0 %v324
    %456 = vmatprep.subr.bf16.mxu0 %v327
    %457 = vmatpush1.bf16.msra.mxu0 %v326
    %458 = vmatprep.subr.bf16.mxu0 %v329
    %459 = vmatpush1.bf16.msra.mxu0 %v328
    %460 = vmatprep.subr.bf16.mxu0 %v331
    %461 = vmatpush1.bf16.msra.mxu0 %v330
    %462 = vmatprep.mubr.bf16.mxu0 %v427
    %463 = vmatmul.mubr.bf16.gmra.mrb[0].mxu0 %v426
    %v464 = vpop.f32.mrb[0].mxu0
    %v465 = vadd.f32 %v412, %v464
    %v466 = vpop.f32.mrb[0].mxu0
    %v467 = vadd.f32 %v414, %v466
    %v468 = vpop.f32.mrb[0].mxu0
    %v469 = vadd.f32 %v416, %v468
    %v470 = vpop.f32.mrb[0].mxu0
    %v471 = vadd.f32 %v418, %v470
    %472 = vdwg.mxu0
    %v473 = vld [vmem:[#allocation2] sm:$0xee]
    %v474 = vld [vmem:[#allocation2 + $0x8] sm:$0xff]
    %s475 = scalar_lea.vmem [#allocation4], 512
    %v476 = vld [vmem:[%s475] sm:$0xff]
    %v477 = vld [vmem:[%s475 + $0x8] sm:$0xff]
    %v478 = vld [vmem:[%s475 + $0x10] sm:$0xff]
    %v479 = vld [vmem:[%s475 + $0x18] sm:$0xff]
    %v480 = vld [vmem:[%s475 + $0x20] sm:$0xff]
    %v481 = vld [vmem:[%s475 + $0x28] sm:$0xff]
    %v482 = vld [vmem:[%s475 + $0x30] sm:$0xff]
    %v483 = vld [vmem:[%s475 + $0x38] sm:$0xff]
    %v484 = vld [vmem:[%s475 + $0x40] sm:$0xff]
    %v485 = vld [vmem:[%s475 + $0x48] sm:$0xff]
    %v486 = vld [vmem:[%s475 + $0x50] sm:$0xff]
    %v487 = vld [vmem:[%s475 + $0x58] sm:$0xff]
    %v488 = vld [vmem:[%s475 + $0x60] sm:$0xff]
    %v489 = vld [vmem:[%s475 + $0x68] sm:$0xff]
    %v490 = vld [vmem:[%s475 + $0x70] sm:$0xff]
    %v491 = vld [vmem:[%s475 + $0x78] sm:$0xff]
    %v492 = vld [vmem:[%s475 + $0x80] sm:$0xff]
    %v493 = vld [vmem:[%s475 + $0x88] sm:$0xff]
    %v494 = vld [vmem:[%s475 + $0x90] sm:$0xff]
    %v495 = vld [vmem:[%s475 + $0x98] sm:$0xff]
    %v496 = vld [vmem:[%s475 + $0xa0] sm:$0xff]
    %v497 = vld [vmem:[%s475 + $0xa8] sm:$0xff]
    %v498 = vld [vmem:[%s475 + $0xb0] sm:$0xff]
    %v499 = vld [vmem:[%s475 + $0xb8] sm:$0xff]
    %v500 = vld [vmem:[%s475 + $0xc0] sm:$0xff]
    %v501 = vld [vmem:[%s475 + $0xc8] sm:$0xff]
    %v502 = vld [vmem:[%s475 + $0xd0] sm:$0xff]
    %v503 = vld [vmem:[%s475 + $0xd8] sm:$0xff]
    %v504 = vld [vmem:[%s475 + $0xe0] sm:$0xff]
    %v505 = vld [vmem:[%s475 + $0xe8] sm:$0xff]
    %v506 = vld [vmem:[%s475 + $0xf0] sm:$0xff]
    %v507 = vld [vmem:[%s475 + $0xf8] sm:$0xff]
    %v510 = vunpack.c.l.b16 %v473
    %v511 = vunpack.c.h.b16 %v473
    %v512 = vunpack.c.l.b16 %v474
    %v513 = vunpack.c.h.b16 %v474
    %v514 = vpack.c.b16 %v512, %v510
    %v515 = vpack.c.b16 %v513, %v511
    %v516 = vrot.slane %v514, 1
    %v517 = vrot.slane %v515, 1
    %520 = vmatprep.subr.bf16.mxu0 %v477
    %521 = vmatpush1.bf16.msra.mxu0 %v476
    %522 = vmatprep.subr.bf16.mxu0 %v479
    %523 = vmatpush1.bf16.msra.mxu0 %v478
    %524 = vmatprep.subr.bf16.mxu0 %v481
    %525 = vmatpush1.bf16.msra.mxu0 %v480
    %526 = vmatprep.subr.bf16.mxu0 %v483
    %527 = vmatpush1.bf16.msra.mxu0 %v482
    %528 = vmatprep.subr.bf16.mxu0 %v485
    %529 = vmatpush1.bf16.msra.mxu0 %v484
    %530 = vmatprep.subr.bf16.mxu0 %v487
    %531 = vmatpush1.bf16.msra.mxu0 %v486
    %532 = vmatprep.subr.bf16.mxu0 %v489
    %533 = vmatpush1.bf16.msra.mxu0 %v488
    %534 = vmatprep.subr.bf16.mxu0 %v491
    %535 = vmatpush1.bf16.msra.mxu0 %v490
    %536 = vmatprep.subr.bf16.mxu0 %v493
    %537 = vmatpush1.bf16.msra.mxu0 %v492
    %538 = vmatprep.subr.bf16.mxu0 %v495
    %539 = vmatpush1.bf16.msra.mxu0 %v494
    %540 = vmatprep.subr.bf16.mxu0 %v497
    %541 = vmatpush1.bf16.msra.mxu0 %v496
    %542 = vmatprep.subr.bf16.mxu0 %v499
    %543 = vmatpush1.bf16.msra.mxu0 %v498
    %544 = vmatprep.subr.bf16.mxu0 %v501
    %545 = vmatpush1.bf16.msra.mxu0 %v500
    %546 = vmatprep.subr.bf16.mxu0 %v503
    %547 = vmatpush1.bf16.msra.mxu0 %v502
    %548 = vmatprep.subr.bf16.mxu0 %v505
    %549 = vmatpush1.bf16.msra.mxu0 %v504
    %550 = vmatprep.subr.bf16.mxu0 %v507
    %551 = vmatpush1.bf16.msra.mxu0 %v506
    %552 = vmatprep.mubr.bf16.mxu0 %v517
    %553 = vmatmul.mubr.bf16.gmra.mrb[0].mxu0 %v516
    %v554 = vpop.f32.mrb[0].mxu0
    %v555 = vadd.f32 0.0, %v554
    %v556 = vpop.f32.mrb[0].mxu0
    %v557 = vadd.f32 0.0, %v556
    %v558 = vpop.f32.mrb[0].mxu0
    %v559 = vadd.f32 0.0, %v558
    %v560 = vpop.f32.mrb[0].mxu0
    %v561 = vadd.f32 0.0, %v560
    %562 = vdwg.mxu0
    %v563 = vadd.f32 %v465, %v555
    %v564 = vadd.f32 %v467, %v557
    %v565 = vadd.f32 %v469, %v559
    %v566 = vadd.f32 %v471, %v561
    %v567 = vld [vmem:[%s4] sm:$0x3]
    %v569 = vlaneseq
    %v570 = vshrl.u32 %v569, 7
    %v571 = vsub.s32 0, %v570
    %v572 = vrot.slane %v567, %v571
    %v573 = vlaneseq
    %v574 = vshrl.u32 %v573, 7
    %v575 = vsub.s32 1, %v574
    %v576 = vrot.slane %v567, %v575
    %v579 = vadd.f32 %v563, %v572
    %v580 = vadd.f32 %v564, %v576
    %v581 = vadd.f32 %v565, %v572
    %v582 = vadd.f32 %v566, %v576
    %v583 = vmax.f32 %v579, 0.0
    %v584 = vmax.f32 %v580, 0.0
    %v585 = vmax.f32 %v581, 0.0
    %v586 = vmax.f32 %v582, 0.0
    %v587 = vpack.c.bf16 %v585, %v583
    %v588 = vpack.c.bf16 %v586, %v584
    %v591 = vcombine.low %v587, %v588
    %v593 = vunpack.c.l.s4 1966171168
    %v594 = vunpack.c.0.s8 %v593
    %v595 = vlaneseq
    %v596 = vshrl.u32 %v595, 7
    %v597 = vsub.s32 %v594, %v596
    %v598 = vrot.slane %v591, %v597
    %v600 = vunpack.c.l.s4 1966171168
    %v601 = vunpack.c.0.s8 %v600
    %v602 = vlaneseq
    %v603 = vshrl.u32 %v602, 7
    %v604 = vsub.s32 %v601, %v603
    %v605 = vrot.slane %v598, %v604
    %607 = vst [vmem:[#allocation3] sm:$0x3] %v605
    %v608 = vcombine.high %v598, %v598
    %v610 = vunpack.c.l.s4 1966171168
    %v611 = vunpack.c.0.s8 %v610
    %v612 = vlaneseq
    %v613 = vshrl.u32 %v612, 7
    %v614 = vsub.s32 %v611, %v613
    %v615 = vrot.slane %v608, %v614
    %617 = vst [vmem:[#allocation3 + $0x2] sm:$0x3] %v615
    %v618 = vcombine.high %v605, %v605
    %620 = vst [vmem:[#allocation3 + $0x4] sm:$0x3] %v618
    %v621 = vcombine.high %v615, %v615
    %623 = vst [vmem:[#allocation3 + $0x6] sm:$0x3] %v621
    %v624 = vcombine.high %v587, %v588
    %v626 = vunpack.c.l.s4 1966171168
    %v627 = vunpack.c.0.s8 %v626
    %v628 = vlaneseq
    %v629 = vshrl.u32 %v628, 7
    %v630 = vsub.s32 %v627, %v629
    %v631 = vrot.slane %v624, %v630
    %v633 = vunpack.c.l.s4 1966171168
    %v634 = vunpack.c.0.s8 %v633
    %v635 = vlaneseq
    %v636 = vshrl.u32 %v635, 7
    %v637 = vsub.s32 %v634, %v636
    %v638 = vrot.slane %v631, %v637
    %640 = vst [vmem:[#allocation3 + $0x8] sm:$0x3] %v638
    %v641 = vcombine.high %v631, %v631
    %v643 = vunpack.c.l.s4 1966171168
    %v644 = vunpack.c.0.s8 %v643
    %v645 = vlaneseq
    %v646 = vshrl.u32 %v645, 7
    %v647 = vsub.s32 %v644, %v646
    %v648 = vrot.slane %v641, %v647
    %650 = vst [vmem:[#allocation3 + $0xa] sm:$0x3] %v648
    %v651 = vcombine.high %v638, %v638
    %653 = vst [vmem:[#allocation3 + $0xc] sm:$0x3] %v651
    %s654 = smul.u32 4, 224
    %s655 = smul.u32 %s654, 1
    %s656 = sshll.u32 %s655, 4
    %657 = dma.done %s68, %s656
    %v658 = vld [vmem:[#allocation3] sm:$0xff]
    %v659 = vld [vmem:[#allocation3 + $0x8] sm:$0x3f]
    %v660 = vld [vmem:[#allocation5] sm:$0xff]
    %v661 = vld [vmem:[#allocation5 + $0x8] sm:$0xff]
    %v662 = vld [vmem:[#allocation5 + $0x10] sm:$0xff]
    %v663 = vld [vmem:[#allocation5 + $0x18] sm:$0xff]
    %v664 = vld [vmem:[#allocation5 + $0x20] sm:$0xff]
    %v665 = vld [vmem:[#allocation5 + $0x28] sm:$0xff]
    %v666 = vld [vmem:[#allocation5 + $0x30] sm:$0xff]
    %v667 = vld [vmem:[#allocation5 + $0x38] sm:$0xff]
    %v668 = vld [vmem:[#allocation5 + $0x40] sm:$0xff]
    %v669 = vld [vmem:[#allocation5 + $0x48] sm:$0xff]
    %v670 = vld [vmem:[#allocation5 + $0x50] sm:$0xff]
    %v671 = vld [vmem:[#allocation5 + $0x58] sm:$0xff]
    %v672 = vld [vmem:[#allocation5 + $0x60] sm:$0xff]
    %v673 = vld [vmem:[#allocation5 + $0x68] sm:$0xff]
    %v674 = vld [vmem:[#allocation5 + $0x70] sm:$0xff]
    %v675 = vld [vmem:[#allocation5 + $0x78] sm:$0xff]
    %v676 = vld [vmem:[#allocation5 + $0x80] sm:$0xff]
    %v677 = vld [vmem:[#allocation5 + $0x88] sm:$0xff]
    %v678 = vld [vmem:[#allocation5 + $0x90] sm:$0xff]
    %v679 = vld [vmem:[#allocation5 + $0x98] sm:$0xff]
    %v680 = vld [vmem:[#allocation5 + $0xa0] sm:$0xff]
    %v681 = vld [vmem:[#allocation5 + $0xa8] sm:$0xff]
    %v682 = vld [vmem:[#allocation5 + $0xb0] sm:$0xff]
    %v683 = vld [vmem:[#allocation5 + $0xb8] sm:$0xff]
    %v684 = vld [vmem:[#allocation5 + $0xc0] sm:$0xff]
    %v685 = vld [vmem:[#allocation5 + $0xc8] sm:$0xff]
    %v686 = vld [vmem:[#allocation5 + $0xd0] sm:$0xff]
    %v687 = vld [vmem:[#allocation5 + $0xd8] sm:$0xff]
    %v688 = vld [vmem:[#allocation5 + $0xe0] sm:$0xff]
    %v689 = vld [vmem:[#allocation5 + $0xe8] sm:$0xff]
    %v690 = vld [vmem:[#allocation5 + $0xf0] sm:$0xff]
    %v691 = vld [vmem:[#allocation5 + $0xf8] sm:$0xff]
    %v692 = vld [vmem:[#allocation5 + $0x100] sm:$0xff]
    %v693 = vld [vmem:[#allocation5 + $0x108] sm:$0xff]
    %v694 = vld [vmem:[#allocation5 + $0x110] sm:$0xff]
    %v695 = vld [vmem:[#allocation5 + $0x118] sm:$0xff]
    %v696 = vld [vmem:[#allocation5 + $0x120] sm:$0xff]
    %v697 = vld [vmem:[#allocation5 + $0x128] sm:$0xff]
    %v698 = vld [vmem:[#allocation5 + $0x130] sm:$0xff]
    %v699 = vld [vmem:[#allocation5 + $0x138] sm:$0xff]
    %v700 = vld [vmem:[#allocation5 + $0x140] sm:$0xff]
    %v701 = vld [vmem:[#allocation5 + $0x148] sm:$0xff]
    %v702 = vld [vmem:[#allocation5 + $0x150] sm:$0xff]
    %v703 = vld [vmem:[#allocation5 + $0x158] sm:$0xff]
    %v704 = vld [vmem:[#allocation5 + $0x160] sm:$0xff]
    %v705 = vld [vmem:[#allocation5 + $0x168] sm:$0xff]
    %v706 = vld [vmem:[#allocation5 + $0x170] sm:$0xff]
    %v707 = vld [vmem:[#allocation5 + $0x178] sm:$0xff]
    %v708 = vld [vmem:[#allocation5 + $0x180] sm:$0xff]
    %v709 = vld [vmem:[#allocation5 + $0x188] sm:$0xff]
    %v710 = vld [vmem:[#allocation5 + $0x190] sm:$0xff]
    %v711 = vld [vmem:[#allocation5 + $0x198] sm:$0xff]
    %v712 = vld [vmem:[#allocation5 + $0x1a0] sm:$0xff]
    %v713 = vld [vmem:[#allocation5 + $0x1a8] sm:$0xff]
    %v714 = vld [vmem:[#allocation5 + $0x1b0] sm:$0xff]
    %v715 = vld [vmem:[#allocation5 + $0x1b8] sm:$0xff]
    %v716 = vld [vmem:[#allocation5 + $0x1c0] sm:$0xff]
    %v717 = vld [vmem:[#allocation5 + $0x1c8] sm:$0xff]
    %v718 = vld [vmem:[#allocation5 + $0x1d0] sm:$0xff]
    %v719 = vld [vmem:[#allocation5 + $0x1d8] sm:$0xff]
    %v720 = vld [vmem:[#allocation5 + $0x1e0] sm:$0xff]
    %v721 = vld [vmem:[#allocation5 + $0x1e8] sm:$0xff]
    %v722 = vld [vmem:[#allocation5 + $0x1f0] sm:$0xff]
    %v723 = vld [vmem:[#allocation5 + $0x1f8] sm:$0xff]
    %v724 = vld [vmem:[#allocation5 + $0x200] sm:$0xff]
    %v725 = vld [vmem:[#allocation5 + $0x208] sm:$0xff]
    %v726 = vld [vmem:[#allocation5 + $0x210] sm:$0xff]
    %v727 = vld [vmem:[#allocation5 + $0x218] sm:$0xff]
    %v728 = vld [vmem:[#allocation5 + $0x220] sm:$0xff]
    %v729 = vld [vmem:[#allocation5 + $0x228] sm:$0xff]
    %v730 = vld [vmem:[#allocation5 + $0x230] sm:$0xff]
    %v731 = vld [vmem:[#allocation5 + $0x238] sm:$0xff]
    %v732 = vld [vmem:[#allocation5 + $0x240] sm:$0xff]
    %v733 = vld [vmem:[#allocation5 + $0x248] sm:$0xff]
    %v734 = vld [vmem:[#allocation5 + $0x250] sm:$0xff]
    %v735 = vld [vmem:[#allocation5 + $0x258] sm:$0xff]
    %v736 = vld [vmem:[#allocation5 + $0x260] sm:$0xff]
    %v737 = vld [vmem:[#allocation5 + $0x268] sm:$0xff]
    %v738 = vld [vmem:[#allocation5 + $0x270] sm:$0xff]
    %v739 = vld [vmem:[#allocation5 + $0x278] sm:$0xff]
    %v740 = vld [vmem:[#allocation5 + $0x280] sm:$0xff]
    %v741 = vld [vmem:[#allocation5 + $0x288] sm:$0xff]
    %v742 = vld [vmem:[#allocation5 + $0x290] sm:$0xff]
    %v743 = vld [vmem:[#allocation5 + $0x298] sm:$0xff]
    %v744 = vld [vmem:[#allocation5 + $0x2a0] sm:$0xff]
    %v745 = vld [vmem:[#allocation5 + $0x2a8] sm:$0xff]
    %v746 = vld [vmem:[#allocation5 + $0x2b0] sm:$0xff]
    %v747 = vld [vmem:[#allocation5 + $0x2b8] sm:$0xff]
    %v748 = vld [vmem:[#allocation5 + $0x2c0] sm:$0xff]
    %v749 = vld [vmem:[#allocation5 + $0x2c8] sm:$0xff]
    %v750 = vld [vmem:[#allocation5 + $0x2d0] sm:$0xff]
    %v751 = vld [vmem:[#allocation5 + $0x2d8] sm:$0xff]
    %v752 = vld [vmem:[#allocation5 + $0x2e0] sm:$0xff]
    %v753 = vld [vmem:[#allocation5 + $0x2e8] sm:$0xff]
    %v754 = vld [vmem:[#allocation5 + $0x2f0] sm:$0xff]
    %v755 = vld [vmem:[#allocation5 + $0x2f8] sm:$0xff]
    %v756 = vld [vmem:[#allocation5 + $0x300] sm:$0xff]
    %v757 = vld [vmem:[#allocation5 + $0x308] sm:$0xff]
    %v758 = vld [vmem:[#allocation5 + $0x310] sm:$0xff]
    %v759 = vld [vmem:[#allocation5 + $0x318] sm:$0xff]
    %v760 = vld [vmem:[#allocation5 + $0x320] sm:$0xff]
    %v761 = vld [vmem:[#allocation5 + $0x328] sm:$0xff]
    %v762 = vld [vmem:[#allocation5 + $0x330] sm:$0xff]
    %v763 = vld [vmem:[#allocation5 + $0x338] sm:$0xff]
    %v764 = vld [vmem:[#allocation5 + $0x340] sm:$0xff]
    %v765 = vld [vmem:[#allocation5 + $0x348] sm:$0xff]
    %v766 = vld [vmem:[#allocation5 + $0x350] sm:$0xff]
    %v767 = vld [vmem:[#allocation5 + $0x358] sm:$0xff]
    %v768 = vld [vmem:[#allocation5 + $0x360] sm:$0xff]
    %v769 = vld [vmem:[#allocation5 + $0x368] sm:$0xff]
    %v770 = vld [vmem:[#allocation5 + $0x370] sm:$0xff]
    %v771 = vld [vmem:[#allocation5 + $0x378] sm:$0xff]
    %v772 = vld [vmem:[%s6] sm:$0x1]
    %v774 = vlaneseq
    %v775 = vshrl.u32 %v774, 7
    %v776 = vsub.s32 0, %v775
    %v777 = vrot.slane %v772, %v776
    %v781 = vcombine.high %v658, %v658
    %v783 = vunpack.c.l.s4 1966171168
    %v784 = vunpack.c.0.s8 %v783
    %v785 = vlaneseq
    %v786 = vshrl.u32 %v785, 7
    %v787 = vsub.s32 %v784, %v786
    %v788 = vrot.slane %v658, %v787
    %v790 = vunpack.c.l.s4 1966171168
    %v791 = vunpack.c.0.s8 %v790
    %v792 = vlaneseq
    %v793 = vshrl.u32 %v792, 7
    %v794 = vsub.s32 %v791, %v793
    %v795 = vrot.slane %v781, %v794
    %v796 = vcombine.high %v788, %v788
    %v797 = vcombine.high %v795, %v795
    %v799 = vunpack.c.l.s4 1966171168
    %v800 = vunpack.c.0.s8 %v799
    %v801 = vlaneseq
    %v802 = vshrl.u32 %v801, 7
    %v803 = vsub.s32 %v800, %v802
    %v804 = vrot.slane %v788, %v803
    %v806 = vunpack.c.l.s4 1966171168
    %v807 = vunpack.c.0.s8 %v806
    %v808 = vlaneseq
    %v809 = vshrl.u32 %v808, 7
    %v810 = vsub.s32 %v807, %v809
    %v811 = vrot.slane %v795, %v810
    %v813 = vunpack.c.l.s4 1966171168
    %v814 = vunpack.c.0.s8 %v813
    %v815 = vlaneseq
    %v816 = vshrl.u32 %v815, 7
    %v817 = vsub.s32 %v814, %v816
    %v818 = vrot.slane %v796, %v817
    %v820 = vunpack.c.l.s4 1966171168
    %v821 = vunpack.c.0.s8 %v820
    %v822 = vlaneseq
    %v823 = vshrl.u32 %v822, 7
    %v824 = vsub.s32 %v821, %v823
    %v825 = vrot.slane %v797, %v824
    %v826 = vcombine.high %v804, %v804
    %v827 = vcombine.high %v811, %v811
    %v828 = vcombine.high %v818, %v818
    %v829 = vcombine.high %v825, %v825
    %v830 = vcombine.high %v659, %v659
    %v832 = vunpack.c.l.s4 1966171168
    %v833 = vunpack.c.0.s8 %v832
    %v834 = vlaneseq
    %v835 = vshrl.u32 %v834, 7
    %v836 = vsub.s32 %v833, %v835
    %v837 = vrot.slane %v659, %v836
    %v839 = vunpack.c.l.s4 1966171168
    %v840 = vunpack.c.0.s8 %v839
    %v841 = vlaneseq
    %v842 = vshrl.u32 %v841, 7
    %v843 = vsub.s32 %v840, %v842
    %v844 = vrot.slane %v830, %v843
    %v845 = vcombine.high %v837, %v837
    %v846 = vcombine.high %v844, %v844
    %v848 = vunpack.c.l.s4 1966171168
    %v849 = vunpack.c.0.s8 %v848
    %v850 = vlaneseq
    %v851 = vshrl.u32 %v850, 7
    %v852 = vsub.s32 %v849, %v851
    %v853 = vrot.slane %v837, %v852
    %v855 = vunpack.c.l.s4 1966171168
    %v856 = vunpack.c.0.s8 %v855
    %v857 = vlaneseq
    %v858 = vshrl.u32 %v857, 7
    %v859 = vsub.s32 %v856, %v858
    %v860 = vrot.slane %v844, %v859
    %v862 = vunpack.c.l.s4 1966171168
    %v863 = vunpack.c.0.s8 %v862
    %v864 = vlaneseq
    %v865 = vshrl.u32 %v864, 7
    %v866 = vsub.s32 %v863, %v865
    %v867 = vrot.slane %v845, %v866
    %v869 = vunpack.c.l.s4 1966171168
    %v870 = vunpack.c.0.s8 %v869
    %v871 = vlaneseq
    %v872 = vshrl.u32 %v871, 7
    %v873 = vsub.s32 %v870, %v872
    %v874 = vrot.slane %v846, %v873
    %v875 = vcombine.high %v853, %v853
    %v876 = vcombine.high %v867, %v867
    %891 = vmatprep.subr.bf16.mxu0 0
    %892 = vmatpush1.bf16.msra.mxu0 %v660
    %893 = vmatprep.subr.bf16.mxu0 0
    %894 = vmatpush1.bf16.msra.mxu0 %v661
    %895 = vmatprep.subr.bf16.mxu0 0
    %896 = vmatpush1.bf16.msra.mxu0 %v662
    %897 = vmatprep.subr.bf16.mxu0 0
    %898 = vmatpush1.bf16.msra.mxu0 %v663
    %899 = vmatprep.subr.bf16.mxu0 0
    %900 = vmatpush1.bf16.msra.mxu0 %v664
    %901 = vmatprep.subr.bf16.mxu0 0
    %902 = vmatpush1.bf16.msra.mxu0 %v665
    %903 = vmatprep.subr.bf16.mxu0 0
    %904 = vmatpush1.bf16.msra.mxu0 %v666
    %905 = vmatprep.subr.bf16.mxu0 0
    %906 = vmatpush1.bf16.msra.mxu0 %v667
    %907 = vmatprep.subr.bf16.mxu0 0
    %908 = vmatpush1.bf16.msra.mxu0 %v668
    %909 = vmatprep.subr.bf16.mxu0 0
    %910 = vmatpush1.bf16.msra.mxu0 %v669
    %911 = vmatprep.subr.bf16.mxu0 0
    %912 = vmatpush1.bf16.msra.mxu0 %v670
    %913 = vmatprep.subr.bf16.mxu0 0
    %914 = vmatpush1.bf16.msra.mxu0 %v671
    %915 = vmatprep.subr.bf16.mxu0 0
    %916 = vmatpush1.bf16.msra.mxu0 %v672
    %917 = vmatprep.subr.bf16.mxu0 0
    %918 = vmatpush1.bf16.msra.mxu0 %v673
    %919 = vmatprep.subr.bf16.mxu0 0
    %920 = vmatpush1.bf16.msra.mxu0 %v674
    %921 = vmatprep.subr.bf16.mxu0 0
    %922 = vmatpush1.bf16.msra.mxu0 %v675
    %923 = vmatprep.mubr.bf16.mxu0 %v818
    %924 = vmatmul.mubr.bf16.gmra.mrb[0].mxu0 %v804
    %v925 = vpop.f32.mrb[0].mxu0
    %v926 = vadd.f32 %v777, %v925
    %v927 = vpop.f32.mrb[0].mxu0
    %v928 = vpop.f32.mrb[0].mxu0
    %v929 = vpop.f32.mrb[0].mxu0
    %930 = vdwg.mxu0
    %931 = vmatprep.subr.bf16.mxu0 0
    %932 = vmatpush1.bf16.msra.mxu0 %v676
    %933 = vmatprep.subr.bf16.mxu0 0
    %934 = vmatpush1.bf16.msra.mxu0 %v677
    %935 = vmatprep.subr.bf16.mxu0 0
    %936 = vmatpush1.bf16.msra.mxu0 %v678
    %937 = vmatprep.subr.bf16.mxu0 0
    %938 = vmatpush1.bf16.msra.mxu0 %v679
    %939 = vmatprep.subr.bf16.mxu0 0
    %940 = vmatpush1.bf16.msra.mxu0 %v680
    %941 = vmatprep.subr.bf16.mxu0 0
    %942 = vmatpush1.bf16.msra.mxu0 %v681
    %943 = vmatprep.subr.bf16.mxu0 0
    %944 = vmatpush1.bf16.msra.mxu0 %v682
    %945 = vmatprep.subr.bf16.mxu0 0
    %946 = vmatpush1.bf16.msra.mxu0 %v683
    %947 = vmatprep.subr.bf16.mxu0 0
    %948 = vmatpush1.bf16.msra.mxu0 %v684
    %949 = vmatprep.subr.bf16.mxu0 0
    %950 = vmatpush1.bf16.msra.mxu0 %v685
    %951 = vmatprep.subr.bf16.mxu0 0
    %952 = vmatpush1.bf16.msra.mxu0 %v686
    %953 = vmatprep.subr.bf16.mxu0 0
    %954 = vmatpush1.bf16.msra.mxu0 %v687
    %955 = vmatprep.subr.bf16.mxu0 0
    %956 = vmatpush1.bf16.msra.mxu0 %v688
    %957 = vmatprep.subr.bf16.mxu0 0
    %958 = vmatpush1.bf16.msra.mxu0 %v689
    %959 = vmatprep.subr.bf16.mxu0 0
    %960 = vmatpush1.bf16.msra.mxu0 %v690
    %961 = vmatprep.subr.bf16.mxu0 0
    %962 = vmatpush1.bf16.msra.mxu0 %v691
    %963 = vmatprep.mubr.bf16.mxu0 %v828
    %964 = vmatmul.mubr.bf16.gmra.mrb[0].mxu0 %v826
    %v965 = vpop.f32.mrb[0].mxu0
    %v966 = vadd.f32 %v926, %v965
    %v967 = vpop.f32.mrb[0].mxu0
    %v968 = vpop.f32.mrb[0].mxu0
    %v969 = vpop.f32.mrb[0].mxu0
    %970 = vdwg.mxu0
    %971 = vmatprep.subr.bf16.mxu0 0
    %972 = vmatpush1.bf16.msra.mxu0 %v692
    %973 = vmatprep.subr.bf16.mxu0 0
    %974 = vmatpush1.bf16.msra.mxu0 %v693
    %975 = vmatprep.subr.bf16.mxu0 0
    %976 = vmatpush1.bf16.msra.mxu0 %v694
    %977 = vmatprep.subr.bf16.mxu0 0
    %978 = vmatpush1.bf16.msra.mxu0 %v695
    %979 = vmatprep.subr.bf16.mxu0 0
    %980 = vmatpush1.bf16.msra.mxu0 %v696
    %981 = vmatprep.subr.bf16.mxu0 0
    %982 = vmatpush1.bf16.msra.mxu0 %v697
    %983 = vmatprep.subr.bf16.mxu0 0
    %984 = vmatpush1.bf16.msra.mxu0 %v698
    %985 = vmatprep.subr.bf16.mxu0 0
    %986 = vmatpush1.bf16.msra.mxu0 %v699
    %987 = vmatprep.subr.bf16.mxu0 0
    %988 = vmatpush1.bf16.msra.mxu0 %v700
    %989 = vmatprep.subr.bf16.mxu0 0
    %990 = vmatpush1.bf16.msra.mxu0 %v701
    %991 = vmatprep.subr.bf16.mxu0 0
    %992 = vmatpush1.bf16.msra.mxu0 %v702
    %993 = vmatprep.subr.bf16.mxu0 0
    %994 = vmatpush1.bf16.msra.mxu0 %v703
    %995 = vmatprep.subr.bf16.mxu0 0
    %996 = vmatpush1.bf16.msra.mxu0 %v704
    %997 = vmatprep.subr.bf16.mxu0 0
    %998 = vmatpush1.bf16.msra.mxu0 %v705
    %999 = vmatprep.subr.bf16.mxu0 0
    %1000 = vmatpush1.bf16.msra.mxu0 %v706
    %1001 = vmatprep.subr.bf16.mxu0 0
    %1002 = vmatpush1.bf16.msra.mxu0 %v707
    %1003 = vmatprep.mubr.bf16.mxu0 %v825
    %1004 = vmatmul.mubr.bf16.gmra.mrb[0].mxu0 %v811
    %v1005 = vpop.f32.mrb[0].mxu0
    %v1006 = vadd.f32 %v966, %v1005
    %v1007 = vpop.f32.mrb[0].mxu0
    %v1008 = vpop.f32.mrb[0].mxu0
    %v1009 = vpop.f32.mrb[0].mxu0
    %1010 = vdwg.mxu0
    %1011 = vmatprep.subr.bf16.mxu0 0
    %1012 = vmatpush1.bf16.msra.mxu0 %v708
    %1013 = vmatprep.subr.bf16.mxu0 0
    %1014 = vmatpush1.bf16.msra.mxu0 %v709
    %1015 = vmatprep.subr.bf16.mxu0 0
    %1016 = vmatpush1.bf16.msra.mxu0 %v710
    %1017 = vmatprep.subr.bf16.mxu0 0
    %1018 = vmatpush1.bf16.msra.mxu0 %v711
    %1019 = vmatprep.subr.bf16.mxu0 0
    %1020 = vmatpush1.bf16.msra.mxu0 %v712
    %1021 = vmatprep.subr.bf16.mxu0 0
    %1022 = vmatpush1.bf16.msra.mxu0 %v713
    %1023 = vmatprep.subr.bf16.mxu0 0
    %1024 = vmatpush1.bf16.msra.mxu0 %v714
    %1025 = vmatprep.subr.bf16.mxu0 0
    %1026 = vmatpush1.bf16.msra.mxu0 %v715
    %1027 = vmatprep.subr.bf16.mxu0 0
    %1028 = vmatpush1.bf16.msra.mxu0 %v716
    %1029 = vmatprep.subr.bf16.mxu0 0
    %1030 = vmatpush1.bf16.msra.mxu0 %v717
    %1031 = vmatprep.subr.bf16.mxu0 0
    %1032 = vmatpush1.bf16.msra.mxu0 %v718
    %1033 = vmatprep.subr.bf16.mxu0 0
    %1034 = vmatpush1.bf16.msra.mxu0 %v719
    %1035 = vmatprep.subr.bf16.mxu0 0
    %1036 = vmatpush1.bf16.msra.mxu0 %v720
    %1037 = vmatprep.subr.bf16.mxu0 0
    %1038 = vmatpush1.bf16.msra.mxu0 %v721
    %1039 = vmatprep.subr.bf16.mxu0 0
    %1040 = vmatpush1.bf16.msra.mxu0 %v722
    %1041 = vmatprep.subr.bf16.mxu0 0
    %1042 = vmatpush1.bf16.msra.mxu0 %v723
    %1043 = vmatprep.mubr.bf16.mxu0 %v829
    %1044 = vmatmul.mubr.bf16.gmra.mrb[0].mxu0 %v827
    %v1045 = vpop.f32.mrb[0].mxu0
    %v1046 = vadd.f32 %v1006, %v1045
    %v1047 = vpop.f32.mrb[0].mxu0
    %v1048 = vpop.f32.mrb[0].mxu0
    %v1049 = vpop.f32.mrb[0].mxu0
    %1050 = vdwg.mxu0
    %1051 = vmatprep.subr.bf16.mxu0 0
    %1052 = vmatpush1.bf16.msra.mxu0 %v724
    %1053 = vmatprep.subr.bf16.mxu0 0
    %1054 = vmatpush1.bf16.msra.mxu0 %v725
    %1055 = vmatprep.subr.bf16.mxu0 0
    %1056 = vmatpush1.bf16.msra.mxu0 %v726
    %1057 = vmatprep.subr.bf16.mxu0 0
    %1058 = vmatpush1.bf16.msra.mxu0 %v727
    %1059 = vmatprep.subr.bf16.mxu0 0
    %1060 = vmatpush1.bf16.msra.mxu0 %v728
    %1061 = vmatprep.subr.bf16.mxu0 0
    %1062 = vmatpush1.bf16.msra.mxu0 %v729
    %1063 = vmatprep.subr.bf16.mxu0 0
    %1064 = vmatpush1.bf16.msra.mxu0 %v730
    %1065 = vmatprep.subr.bf16.mxu0 0
    %1066 = vmatpush1.bf16.msra.mxu0 %v731
    %1067 = vmatprep.subr.bf16.mxu0 0
    %1068 = vmatpush1.bf16.msra.mxu0 %v732
    %1069 = vmatprep.subr.bf16.mxu0 0
    %1070 = vmatpush1.bf16.msra.mxu0 %v733
    %1071 = vmatprep.subr.bf16.mxu0 0
    %1072 = vmatpush1.bf16.msra.mxu0 %v734
    %1073 = vmatprep.subr.bf16.mxu0 0
    %1074 = vmatpush1.bf16.msra.mxu0 %v735
    %1075 = vmatprep.subr.bf16.mxu0 0
    %1076 = vmatpush1.bf16.msra.mxu0 %v736
    %1077 = vmatprep.subr.bf16.mxu0 0
    %1078 = vmatpush1.bf16.msra.mxu0 %v737
    %1079 = vmatprep.subr.bf16.mxu0 0
    %1080 = vmatpush1.bf16.msra.mxu0 %v738
    %1081 = vmatprep.subr.bf16.mxu0 0
    %1082 = vmatpush1.bf16.msra.mxu0 %v739
    %1083 = vmatprep.mubr.bf16.mxu0 %v867
    %1084 = vmatmul.mubr.bf16.gmra.mrb[0].mxu0 %v853
    %v1085 = vpop.f32.mrb[0].mxu0
    %v1086 = vadd.f32 %v1046, %v1085
    %v1087 = vpop.f32.mrb[0].mxu0
    %v1088 = vpop.f32.mrb[0].mxu0
    %v1089 = vpop.f32.mrb[0].mxu0
    %1090 = vdwg.mxu0
    %1091 = vmatprep.subr.bf16.mxu0 0
    %1092 = vmatpush1.bf16.msra.mxu0 %v740
    %1093 = vmatprep.subr.bf16.mxu0 0
    %1094 = vmatpush1.bf16.msra.mxu0 %v741
    %1095 = vmatprep.subr.bf16.mxu0 0
    %1096 = vmatpush1.bf16.msra.mxu0 %v742
    %1097 = vmatprep.subr.bf16.mxu0 0
    %1098 = vmatpush1.bf16.msra.mxu0 %v743
    %1099 = vmatprep.subr.bf16.mxu0 0
    %1100 = vmatpush1.bf16.msra.mxu0 %v744
    %1101 = vmatprep.subr.bf16.mxu0 0
    %1102 = vmatpush1.bf16.msra.mxu0 %v745
    %1103 = vmatprep.subr.bf16.mxu0 0
    %1104 = vmatpush1.bf16.msra.mxu0 %v746
    %1105 = vmatprep.subr.bf16.mxu0 0
    %1106 = vmatpush1.bf16.msra.mxu0 %v747
    %1107 = vmatprep.subr.bf16.mxu0 0
    %1108 = vmatpush1.bf16.msra.mxu0 %v748
    %1109 = vmatprep.subr.bf16.mxu0 0
    %1110 = vmatpush1.bf16.msra.mxu0 %v749
    %1111 = vmatprep.subr.bf16.mxu0 0
    %1112 = vmatpush1.bf16.msra.mxu0 %v750
    %1113 = vmatprep.subr.bf16.mxu0 0
    %1114 = vmatpush1.bf16.msra.mxu0 %v751
    %1115 = vmatprep.subr.bf16.mxu0 0
    %1116 = vmatpush1.bf16.msra.mxu0 %v752
    %1117 = vmatprep.subr.bf16.mxu0 0
    %1118 = vmatpush1.bf16.msra.mxu0 %v753
    %1119 = vmatprep.subr.bf16.mxu0 0
    %1120 = vmatpush1.bf16.msra.mxu0 %v754
    %1121 = vmatprep.subr.bf16.mxu0 0
    %1122 = vmatpush1.bf16.msra.mxu0 %v755
    %1123 = vmatprep.mubr.bf16.mxu0 %v876
    %1124 = vmatmul.mubr.bf16.gmra.mrb[0].mxu0 %v875
    %v1125 = vpop.f32.mrb[0].mxu0
    %v1126 = vadd.f32 %v1086, %v1125
    %v1127 = vpop.f32.mrb[0].mxu0
    %v1128 = vpop.f32.mrb[0].mxu0
    %v1129 = vpop.f32.mrb[0].mxu0
    %1130 = vdwg.mxu0
    %1131 = vmatprep.subr.bf16.mxu0 0
    %1132 = vmatpush1.bf16.msra.mxu0 %v756
    %1133 = vmatprep.subr.bf16.mxu0 0
    %1134 = vmatpush1.bf16.msra.mxu0 %v757
    %1135 = vmatprep.subr.bf16.mxu0 0
    %1136 = vmatpush1.bf16.msra.mxu0 %v758
    %1137 = vmatprep.subr.bf16.mxu0 0
    %1138 = vmatpush1.bf16.msra.mxu0 %v759
    %1139 = vmatprep.subr.bf16.mxu0 0
    %1140 = vmatpush1.bf16.msra.mxu0 %v760
    %1141 = vmatprep.subr.bf16.mxu0 0
    %1142 = vmatpush1.bf16.msra.mxu0 %v761
    %1143 = vmatprep.subr.bf16.mxu0 0
    %1144 = vmatpush1.bf16.msra.mxu0 %v762
    %1145 = vmatprep.subr.bf16.mxu0 0
    %1146 = vmatpush1.bf16.msra.mxu0 %v763
    %1147 = vmatprep.subr.bf16.mxu0 0
    %1148 = vmatpush1.bf16.msra.mxu0 %v764
    %1149 = vmatprep.subr.bf16.mxu0 0
    %1150 = vmatpush1.bf16.msra.mxu0 %v765
    %1151 = vmatprep.subr.bf16.mxu0 0
    %1152 = vmatpush1.bf16.msra.mxu0 %v766
    %1153 = vmatprep.subr.bf16.mxu0 0
    %1154 = vmatpush1.bf16.msra.mxu0 %v767
    %1155 = vmatprep.subr.bf16.mxu0 0
    %1156 = vmatpush1.bf16.msra.mxu0 %v768
    %1157 = vmatprep.subr.bf16.mxu0 0
    %1158 = vmatpush1.bf16.msra.mxu0 %v769
    %1159 = vmatprep.subr.bf16.mxu0 0
    %1160 = vmatpush1.bf16.msra.mxu0 %v770
    %1161 = vmatprep.subr.bf16.mxu0 0
    %1162 = vmatpush1.bf16.msra.mxu0 %v771
    %1163 = vmatprep.mubr.bf16.mxu0 %v874
    %1164 = vmatmul.mubr.bf16.gmra.mrb[0].mxu0 %v860
    %v1165 = vpop.f32.mrb[0].mxu0
    %v1166 = vadd.f32 %v1126, %v1165
    %v1167 = vpop.f32.mrb[0].mxu0
    %v1168 = vpop.f32.mrb[0].mxu0
    %v1169 = vpop.f32.mrb[0].mxu0
    %1170 = vdwg.mxu0
    %v1171 = vmax.f32 %v1166, 0.0
    %v1172 = vpack.c.bf16 %v1171, %v1171
    %v1173 = vld [vmem:[%s7] sm:$0xf]
    %v1174 = vld [vmem:[%s7 + $0x4] sm:$0xf]
    %v1175 = vld [vmem:[%s7 + $0x8] sm:$0xf]
    %v1176 = vld [vmem:[%s7 + $0xc] sm:$0xf]
    %v1177 = vld [vmem:[%s7 + $0x10] sm:$0xf]
    %v1178 = vld [vmem:[%s7 + $0x14] sm:$0xf]
    %v1179 = vld [vmem:[%s7 + $0x18] sm:$0xf]
    %v1180 = vld [vmem:[%s7 + $0x1c] sm:$0xf]
    %v1181 = vld [vmem:[%s7 + $0x20] sm:$0xf]
    %v1182 = vld [vmem:[%s7 + $0x24] sm:$0xf]
    %v1183 = vld [vmem:[%s7 + $0x28] sm:$0xf]
    %v1184 = vld [vmem:[%s7 + $0x2c] sm:$0xf]
    %v1185 = vld [vmem:[%s7 + $0x30] sm:$0xf]
    %v1186 = vld [vmem:[%s7 + $0x34] sm:$0xf]
    %v1187 = vld [vmem:[%s7 + $0x38] sm:$0xf]
    %v1188 = vld [vmem:[%s7 + $0x3c] sm:$0xf]
    %v1189 = vld [vmem:[%s8] sm:$0x1]
    %v1191 = vlaneseq
    %v1192 = vshrl.u32 %v1191, 7
    %v1193 = vsub.s32 0, %v1192
    %v1194 = vrot.slane %v1189, %v1193
    %v1212 = vunpack.c.l.b16 %v1173
    %v1213 = vunpack.c.l.b16 %v1174
    %v1214 = vunpack.c.l.b16 %v1175
    %v1215 = vunpack.c.l.b16 %v1176
    %v1216 = vunpack.c.l.b16 %v1177
    %v1217 = vunpack.c.l.b16 %v1178
    %v1218 = vunpack.c.l.b16 %v1179
    %v1219 = vunpack.c.l.b16 %v1180
    %v1220 = vunpack.c.l.b16 %v1181
    %v1221 = vunpack.c.l.b16 %v1182
    %v1222 = vunpack.c.l.b16 %v1183
    %v1223 = vunpack.c.l.b16 %v1184
    %v1224 = vunpack.c.l.b16 %v1185
    %v1225 = vunpack.c.l.b16 %v1186
    %v1226 = vunpack.c.l.b16 %v1187
    %v1227 = vunpack.c.l.b16 %v1188
    %v1228 = vpack.c.b16 %v1213, %v1212
    %v1229 = vpack.c.b16 %v1215, %v1214
    %v1230 = vpack.c.b16 %v1217, %v1216
    %v1231 = vpack.c.b16 %v1219, %v1218
    %v1232 = vpack.c.b16 %v1221, %v1220
    %v1233 = vpack.c.b16 %v1223, %v1222
    %v1234 = vpack.c.b16 %v1225, %v1224
    %v1235 = vpack.c.b16 %v1227, %v1226
    %1244 = vmatprep.subr.bf16.mxu0 0
    %1245 = vmatpush1.bf16.msra.mxu0 %v1228
    %1246 = vmatprep.subr.bf16.mxu0 0
    %1247 = vmatpush1.bf16.msra.mxu0 %v1229
    %1248 = vmatprep.subr.bf16.mxu0 0
    %1249 = vmatpush1.bf16.msra.mxu0 %v1230
    %1250 = vmatprep.subr.bf16.mxu0 0
    %1251 = vmatpush1.bf16.msra.mxu0 %v1231
    %1252 = vmatprep.subr.bf16.mxu0 0
    %1253 = vmatpush1.bf16.msra.mxu0 %v1232
    %1254 = vmatprep.subr.bf16.mxu0 0
    %1255 = vmatpush1.bf16.msra.mxu0 %v1233
    %1256 = vmatprep.subr.bf16.mxu0 0
    %1257 = vmatpush1.bf16.msra.mxu0 %v1234
    %1258 = vmatprep.subr.bf16.mxu0 0
    %1259 = vmatpush1.bf16.msra.mxu0 %v1235
    %1260 = vmatprep.subr.bf16.mxu0 0
    %1261 = vmatpush1.bf16.msra.mxu0 0
    %1262 = vmatprep.subr.bf16.mxu0 0
    %1263 = vmatpush1.bf16.msra.mxu0 0
    %1264 = vmatprep.subr.bf16.mxu0 0
    %1265 = vmatpush1.bf16.msra.mxu0 0
    %1266 = vmatprep.subr.bf16.mxu0 0
    %1267 = vmatpush1.bf16.msra.mxu0 0
    %1268 = vmatprep.subr.bf16.mxu0 0
    %1269 = vmatpush1.bf16.msra.mxu0 0
    %1270 = vmatprep.subr.bf16.mxu0 0
    %1271 = vmatpush1.bf16.msra.mxu0 0
    %1272 = vmatprep.subr.bf16.mxu0 0
    %1273 = vmatpush1.bf16.msra.mxu0 0
    %1274 = vmatprep.subr.bf16.mxu0 0
    %1275 = vmatpush1.bf16.msra.mxu0 0
    %1276 = vmatprep.mubr.bf16.mxu0 0
    %1277 = vmatmul.mubr.bf16.gmra.mrb[0].mxu0 %v1172
    %v1278 = vpop.f32.mrb[0].mxu0
    %v1279 = vadd.f32 %v1194, %v1278
    %v1280 = vpop.f32.mrb[0].mxu0
    %v1281 = vpop.f32.mrb[0].mxu0
    %v1282 = vpop.f32.mrb[0].mxu0
    %1283 = vdwg.mxu0
    %v1284 = vld [vmem:[%s9] sm:$0x3]
    %v1285 = vmul.f32 %v1279, 0.5
    %v1286 = vmul.f32 %v1285, 1.442695
    %v1287 = vpow.pop %v1286
    %1289 = vrot.lane.b32.xlu0 %v1287, 112
    %v1290 = vpop.permute.xlu0 %1289
    %v1292 = vmul.f32 %v1284, %v1290
    %v1293 = vadd.f32 %v1279, %v1292
    %vm1294 = vcmask 123904
    %1295 = vst.msk [vmem:[#allocation7] sm:$0x3] %vm1294, %v1293
    // Predicated region
    $region38: #{encoder_forward.1} parent=1 // pred_check
      _
    $region39: #{encoder_forward.1} parent=1 // pred_check_branch
      %1297 = sbr.rel (0) target = $region41
    $region40: #{encoder_forward.1} parent=1 // pred_region
      %s1299 = ssub.s32 32, 32
      %1300 = vsyncadd [#allocation8], %s1299
      %s1302 = sshll.u32 [#allocation7], 4
      %s1303 = int_to_ptr.vmem [resolvable:$true] %s1302
      %1305 = dma.vmem_to_hbm [thread:$0]  %s1303, 32, %s10, [#allocation8]
    $region41: #{encoder_forward.1} parent=1 // pred_fallthru
      _
    // Predicated region
    $region42: #{encoder_forward.1} parent=1 // pred_check
      _
    $region43: #{encoder_forward.1} parent=1 // pred_check_branch
      %1307 = sbr.rel (0) target = $region45
    $region44: #{encoder_forward.1} parent=1 // pred_region
      %1308 = dma.done [#allocation8], 32
    $region45: #{encoder_forward.1} parent=1 // pred_fallthru
      _
    %1309 = vsyncpa [#allocation8], 1
  %1310 = vsyncmov [#allocation6]
  %s1311 = vpop.sfrf %1310
  %p1312 = scmp.eq.s32.totalorder %s1311, 0
  %p1313 = pneg %p1312
  %1315 = shalt.err (%p1313)
  %s1316 = scalar_lea.sflag [#allocation6], 1
  %1317 = vsyncmov %s1316
  %s1318 = vpop.sfrf %1317
  %p1319 = scmp.eq.s32.totalorder %s1318, 0
  %p1320 = pneg %p1319
  %1322 = shalt.err (%p1320)

</llo_original>
